<compile_context>
chip_gen: v7x
topology: tpu7x:2x2x1
jax: 0.10.0
libtpu: 0.0.40
codegen_flags: <defaults>
</compile_context>

<pallas_src>
import jax
import jax.numpy as jnp
from jax import lax
from jax.experimental import pallas as pl
from jax.experimental.pallas import tpu as pltpu


def _char_lstm_kernel(x_ref, wih_ref, whh_ref, b_ref, wfc_ref, bfc_ref,
                      logits_ref, hn_ref, cn_ref, gx_sc):
    Bp, H = hn_ref.shape
    T = x_ref.shape[0] // Bp

    # Hoisted input projection: all timesteps' x-gates (+ bias) in one
    # MXU-friendly matmul, written once to VMEM scratch.
    gx_sc[...] = (jnp.dot(x_ref[...], wih_ref[...],
                          preferred_element_type=jnp.float32)
                  + b_ref[...])                                    # (T*Bp, 4H)

    whh = whh_ref[...]                                             # (H, 4H), loaded once

    def step(t, carry):
        h, c = carry
        row = pl.multiple_of(t * Bp, Bp)                           # sublane-aligned slice start
        gates = gx_sc[pl.ds(row, Bp), :] + jnp.dot(
            h, whh, preferred_element_type=jnp.float32)            # (Bp, 4H)

        # Lane-tile-aligned gate splits (H is a multiple of 128).
        i_g = jax.nn.sigmoid(gates[:, 0 * H:1 * H])
        f_g = jax.nn.sigmoid(gates[:, 1 * H:2 * H])
        g_g = jnp.tanh(gates[:, 2 * H:3 * H])
        o_g = jax.nn.sigmoid(gates[:, 3 * H:4 * H])

        c_new = f_g * c + i_g * g_g
        h_new = o_g * jnp.tanh(c_new)
        return h_new, c_new

    h0 = jnp.zeros((Bp, H), jnp.float32)
    c0 = jnp.zeros((Bp, H), jnp.float32)
    h, c = lax.fori_loop(0, T, step, (h0, c0), unroll=True)

    # Final fc projection on the last hidden state (lane-dense Vp output).
    logits_ref[...] = (jnp.dot(h, wfc_ref[...],
                               preferred_element_type=jnp.float32)
                       + bfc_ref[...])
    hn_ref[...] = h
    cn_ref[...] = c


def char_lstm_forward(x_ids, params):
    """x_ids: (B, T) int32 token ids. Returns (logits, (h_n, c_n)) like the torch module."""
    emb = params["embedding"]           # (V, E)
    wih = params["w_ih"]                # (4H, E)
    whh = params["w_hh"]                # (4H, H)
    b_ih = params["b_ih"]               # (4H,)
    b_hh = params["b_hh"]               # (4H,)
    wfc = params["w_fc"]                # (V, H)
    bfc = params["b_fc"]                # (V,)

    B, T = x_ids.shape
    V, E = emb.shape
    H = whh.shape[1]

    SUB, LANE = 8, 128                  # f32 sublane / lane tiles
    Bp = ((B + SUB - 1) // SUB) * SUB
    Vp = ((V + LANE - 1) // LANE) * LANE

    # Glue: time-major embedding gather + padding + pre-transposes.
    # TODO(synk): the embedding gather could be fused into the kernel via
    # scalar-prefetched token ids (pl.Element BlockSpec) if T / E grow large.
    x_emb = emb[x_ids.T].astype(jnp.float32)                               # (T, B, E)
    x_emb = jnp.pad(x_emb, ((0, 0), (0, Bp - B), (0, 0)))                  # (T, Bp, E)
    x_flat = x_emb.reshape(T * Bp, E)                                      # (T*Bp, E)

    wih_t = wih.T.astype(jnp.float32)                                      # (E, 4H)
    whh_t = whh.T.astype(jnp.float32)                                      # (H, 4H)
    bias = (b_ih + b_hh).reshape(1, 4 * H).astype(jnp.float32)             # (1, 4H)
    wfc_t = jnp.pad(wfc.T.astype(jnp.float32), ((0, 0), (0, Vp - V)))      # (H, Vp)
    bfc_p = jnp.pad(bfc.astype(jnp.float32), (0, Vp - V)).reshape(1, Vp)   # (1, Vp)

    grid_spec = pltpu.PrefetchScalarGridSpec(
        num_scalar_prefetch=0,
        grid=(1,),
        in_specs=[
            pl.BlockSpec((T * Bp, E), lambda i: (0, 0)),
            pl.BlockSpec((E, 4 * H), lambda i: (0, 0)),
            pl.BlockSpec((H, 4 * H), lambda i: (0, 0)),
            pl.BlockSpec((1, 4 * H), lambda i: (0, 0)),
            pl.BlockSpec((H, Vp), lambda i: (0, 0)),
            pl.BlockSpec((1, Vp), lambda i: (0, 0)),
        ],
        out_specs=[
            pl.BlockSpec((Bp, Vp), lambda i: (0, 0)),
            pl.BlockSpec((Bp, H), lambda i: (0, 0)),
            pl.BlockSpec((Bp, H), lambda i: (0, 0)),
        ],
        scratch_shapes=[
            pltpu.VMEM((T * Bp, 4 * H), jnp.float32),   # precomputed x-gates
        ],
    )

    logits_p, h_p, c_p = pl.pallas_call(
        _char_lstm_kernel,
        out_shape=(
            jax.ShapeDtypeStruct((Bp, Vp), jnp.float32),
            jax.ShapeDtypeStruct((Bp, H), jnp.float32),
            jax.ShapeDtypeStruct((Bp, H), jnp.float32),
        ),
        grid_spec=grid_spec,
        compiler_params=pltpu.CompilerParams(
            dimension_semantics=("arbitrary",)),
    )(x_flat, wih_t, whh_t, bias, wfc_t, bfc_p)

    logits = logits_p[:B, :V]
    h_n = h_p[:B][None]
    c_n = c_p[:B][None]
    return logits, (h_n, c_n)


def _reference_forward(x_ids, params):
    """Plain-JAX reference (mirrors torch.nn.LSTM semantics) for validation."""
    emb = params["embedding"]
    wih, whh = params["w_ih"], params["w_hh"]
    b = params["b_ih"] + params["b_hh"]
    wfc, bfc = params["w_fc"], params["b_fc"]
    H = whh.shape[1]

    x_emb = emb[x_ids].astype(jnp.float32)          # (B, T, E)
    B = x_emb.shape[0]
    h = jnp.zeros((B, H), jnp.float32)
    c = jnp.zeros((B, H), jnp.float32)

    def step(carry, x_t):
        h, c = carry
        g = x_t @ wih.T + h @ whh.T + b
        i = jax.nn.sigmoid(g[:, 0 * H:1 * H])
        f = jax.nn.sigmoid(g[:, 1 * H:2 * H])
        gg = jnp.tanh(g[:, 2 * H:3 * H])
        o = jax.nn.sigmoid(g[:, 3 * H:4 * H])
        c = f * c + i * gg
        h = o * jnp.tanh(c)
        return (h, c), None

    (h, c), _ = jax.lax.scan(step, (h, c), jnp.transpose(x_emb, (1, 0, 2)))
    logits = h @ wfc.T + bfc
    return logits, (h[None], c[None])


def init_params(key, vocab_size, embedding_dim=64, hidden_dim=128):
    ks = jax.random.split(key, 7)
    bound = 1.0 / jnp.sqrt(hidden_dim)
    u = lambda k, shape: jax.random.uniform(k, shape, jnp.float32, -bound, bound)
    return {
        "embedding": jax.random.normal(ks[0], (vocab_size, embedding_dim), jnp.float32),
        "w_ih": u(ks[1], (4 * hidden_dim, embedding_dim)),
        "w_hh": u(ks[2], (4 * hidden_dim, hidden_dim)),
        "b_ih": u(ks[3], (4 * hidden_dim,)),
        "b_hh": u(ks[4], (4 * hidden_dim,)),
        "w_fc": u(ks[5], (vocab_size, hidden_dim)),
        "b_fc": u(ks[6], (vocab_size,)),
    }


if __name__ == "__main__":
    B, T = 2, 8
    VOCAB, E, H = 32, 64, 128

    key = jax.random.PRNGKey(0)
    k_param, k_data = jax.random.split(key)
    params = init_params(k_param, VOCAB, E, H)
    x_ids = jax.random.randint(k_data, (B, T), 0, VOCAB, dtype=jnp.int32)

    fwd = jax.jit(char_lstm_forward)     # fuses the wrapper glue (gather/pad/transpose) around the kernel
    logits, (h_n, c_n) = fwd(x_ids, params)
    jax.block_until_ready((logits, h_n, c_n))

    ref_logits, (ref_h, ref_c) = _reference_forward(x_ids, params)
    assert logits.shape == (B, VOCAB)
    assert h_n.shape == (1, B, H) and c_n.shape == (1, B, H)
    assert jnp.allclose(logits, ref_logits, atol=1e-4, rtol=1e-4)
    assert jnp.allclose(h_n, ref_h, atol=1e-4, rtol=1e-4)
    assert jnp.allclose(c_n, ref_c, atol=1e-4, rtol=1e-4)

    print("KERNEL_OK")
</pallas_src>

<mosaic_0001>
module attributes {stable_mosaic.version = 11 : i64} {
  func.func @_char_lstm_kernel(%arg0: i32, %arg1: memref<64x64xf32, #tpu.memory_space<vmem>>, %arg2: memref<64x512xf32, #tpu.memory_space<vmem>>, %arg3: memref<128x512xf32, #tpu.memory_space<vmem>>, %arg4: memref<1x512xf32, #tpu.memory_space<vmem>>, %arg5: memref<128x128xf32, #tpu.memory_space<vmem>>, %arg6: memref<1x128xf32, #tpu.memory_space<vmem>>, %arg7: memref<8x128xf32, #tpu.memory_space<vmem>>, %arg8: memref<8x128xf32, #tpu.memory_space<vmem>>, %arg9: memref<8x128xf32, #tpu.memory_space<vmem>>, %arg10: memref<64x512xf32, #tpu.memory_space<vmem>>) attributes {dimension_semantics = [#tpu.dimension_semantics<arbitrary>], iteration_bounds = array<i64: 1>, scalar_prefetch = 0 : i64, scratch_operands = 1 : i64, tpu.core_type = #tpu.core_type<tc>, window_params = [{pipeline_mode = #tpu.pipeline_mode<synchronous>, transform_indices = @transform_0, window_bounds = array<i64: 64, 64>}, {pipeline_mode = #tpu.pipeline_mode<synchronous>, transform_indices = @transform_1, window_bounds = array<i64: 64, 512>}, {pipeline_mode = #tpu.pipeline_mode<synchronous>, transform_indices = @transform_2, window_bounds = array<i64: 128, 512>}, {pipeline_mode = #tpu.pipeline_mode<synchronous>, transform_indices = @transform_3, window_bounds = array<i64: 1, 512>}, {pipeline_mode = #tpu.pipeline_mode<synchronous>, transform_indices = @transform_4, window_bounds = array<i64: 128, 128>}, {pipeline_mode = #tpu.pipeline_mode<synchronous>, transform_indices = @transform_5, window_bounds = array<i64: 1, 128>}, {pipeline_mode = #tpu.pipeline_mode<synchronous>, transform_indices = @transform_6, window_bounds = array<i64: 8, 128>}, {pipeline_mode = #tpu.pipeline_mode<synchronous>, transform_indices = @transform_7, window_bounds = array<i64: 8, 128>}, {pipeline_mode = #tpu.pipeline_mode<synchronous>, transform_indices = @transform_8, window_bounds = array<i64: 8, 128>}]} {
    %c0 = arith.constant 0 : index
    %c0_0 = arith.constant 0 : index
    %0 = vector.load %arg1[%c0, %c0_0] : memref<64x64xf32, #tpu.memory_space<vmem>>, vector<64x64xf32>
    %c0_1 = arith.constant 0 : index
    %c0_2 = arith.constant 0 : index
    %1 = vector.load %arg2[%c0_1, %c0_2] : memref<64x512xf32, #tpu.memory_space<vmem>>, vector<64x512xf32>
    %cst = arith.constant dense<0.000000e+00> : vector<64x512xf32>
    %2 = tpu.matmul %0, %1, %cst {dimension_numbers = #tpu.dot_dimension_numbers<[1], [0], [0], [1], [0, 0, 1, 1], [], []>} : vector<64x64xf32>, vector<64x512xf32>, vector<64x512xf32> -> vector<64x512xf32>
    %c0_3 = arith.constant 0 : index
    %c0_4 = arith.constant 0 : index
    %3 = vector.load %arg4[%c0_3, %c0_4] : memref<1x512xf32, #tpu.memory_space<vmem>>, vector<1x512xf32>
    %4 = vector.broadcast %3 : vector<1x512xf32> to vector<64x512xf32>
    %5 = arith.addf %2, %4 : vector<64x512xf32>
    %c0_5 = arith.constant 0 : index
    %c0_6 = arith.constant 0 : index
    %6 = vector.load %arg10[%c0_5, %c0_6] : memref<64x512xf32, #tpu.memory_space<vmem>>, vector<64x512xf32>
    tpu.vector_store %arg10[%c0_5, %c0_6], %5 {strides = array<i32>} : memref<64x512xf32, #tpu.memory_space<vmem>>, vector<64x512xf32>,
    %c0_7 = arith.constant 0 : index
    %c0_8 = arith.constant 0 : index
    %7 = vector.load %arg3[%c0_7, %c0_8] : memref<128x512xf32, #tpu.memory_space<vmem>>, vector<128x512xf32>
    %cst_9 = arith.constant 0.000000e+00 : f32
    %8 = vector.broadcast %cst_9 : f32 to vector<8x128xf32>
    %cst_10 = arith.constant 0.000000e+00 : f32
    %9 = vector.broadcast %cst_10 : f32 to vector<8x128xf32>
    %c0_i32 = arith.constant 0 : i32
    %c8_i32 = arith.constant 8 : i32
    %10 = arith.muli %c0_i32, %c8_i32 : i32
    %11 = tpu.assume_multiple %10, 8 : i32
    %12 = arith.index_cast %11 : i32 to index
    %c0_11 = arith.constant 0 : index
    %13 = vector.load %arg10[%12, %c0_11] : memref<64x512xf32, #tpu.memory_space<vmem>>, vector<8x512xf32>
    %cst_12 = arith.constant dense<0.000000e+00> : vector<8x512xf32>
    %14 = tpu.matmul %8, %7, %cst_12 {dimension_numbers = #tpu.dot_dimension_numbers<[1], [0], [0], [1], [0, 0, 1, 1], [], []>} : vector<8x128xf32>, vector<128x512xf32>, vector<8x512xf32> -> vector<8x512xf32>
    %15 = arith.addf %13, %14 : vector<8x512xf32>
    %16 = vector.extract_strided_slice %15 {offsets = [0, 0], sizes = [8, 128], strides = [1, 1]} : vector<8x512xf32> to vector<8x128xf32>
    %17 = arith.negf %16 : vector<8x128xf32>
    %18 = math.exp %17 : vector<8x128xf32>
    %cst_13 = arith.constant 1.000000e+00 : f32
    %19 = vector.broadcast %cst_13 : f32 to vector<8x128xf32>
    %20 = arith.addf %19, %18 : vector<8x128xf32>
    %21 = arith.divf %19, %20 : vector<8x128xf32>
    %22 = vector.extract_strided_slice %15 {offsets = [0, 128], sizes = [8, 128], strides = [1, 1]} : vector<8x512xf32> to vector<8x128xf32>
    %23 = arith.negf %22 : vector<8x128xf32>
    %24 = math.exp %23 : vector<8x128xf32>
    %cst_14 = arith.constant 1.000000e+00 : f32
    %25 = vector.broadcast %cst_14 : f32 to vector<8x128xf32>
    %26 = arith.addf %25, %24 : vector<8x128xf32>
    %27 = arith.divf %25, %26 : vector<8x128xf32>
    %28 = vector.extract_strided_slice %15 {offsets = [0, 256], sizes = [8, 128], strides = [1, 1]} : vector<8x512xf32> to vector<8x128xf32>
    %29 = math.tanh %28 : vector<8x128xf32>
    %30 = vector.extract_strided_slice %15 {offsets = [0, 384], sizes = [8, 128], strides = [1, 1]} : vector<8x512xf32> to vector<8x128xf32>
    %31 = arith.negf %30 : vector<8x128xf32>
    %32 = math.exp %31 : vector<8x128xf32>
    %cst_15 = arith.constant 1.000000e+00 : f32
    %33 = vector.broadcast %cst_15 : f32 to vector<8x128xf32>
    %34 = arith.addf %33, %32 : vector<8x128xf32>
    %35 = arith.divf %33, %34 : vector<8x128xf32>
    %36 = arith.mulf %27, %9 : vector<8x128xf32>
    %37 = arith.mulf %21, %29 : vector<8x128xf32>
    %38 = arith.addf %36, %37 : vector<8x128xf32>
    %39 = math.tanh %38 : vector<8x128xf32>
    %40 = arith.mulf %35, %39 : vector<8x128xf32>
    %c1_i32 = arith.constant 1 : i32
    %c8_i32_16 = arith.constant 8 : i32
    %41 = arith.muli %c1_i32, %c8_i32_16 : i32
    %42 = tpu.assume_multiple %41, 8 : i32
    %43 = arith.index_cast %42 : i32 to index
    %c0_17 = arith.constant 0 : index
    %44 = vector.load %arg10[%43, %c0_17] : memref<64x512xf32, #tpu.memory_space<vmem>>, vector<8x512xf32>
    %cst_18 = arith.constant dense<0.000000e+00> : vector<8x512xf32>
    %45 = tpu.matmul %40, %7, %cst_18 {dimension_numbers = #tpu.dot_dimension_numbers<[1], [0], [0], [1], [0, 0, 1, 1], [], []>} : vector<8x128xf32>, vector<128x512xf32>, vector<8x512xf32> -> vector<8x512xf32>
    %46 = arith.addf %44, %45 : vector<8x512xf32>
    %47 = vector.extract_strided_slice %46 {offsets = [0, 0], sizes = [8, 128], strides = [1, 1]} : vector<8x512xf32> to vector<8x128xf32>
    %48 = arith.negf %47 : vector<8x128xf32>
    %49 = math.exp %48 : vector<8x128xf32>
    %cst_19 = arith.constant 1.000000e+00 : f32
    %50 = vector.broadcast %cst_19 : f32 to vector<8x128xf32>
    %51 = arith.addf %50, %49 : vector<8x128xf32>
    %52 = arith.divf %50, %51 : vector<8x128xf32>
    %53 = vector.extract_strided_slice %46 {offsets = [0, 128], sizes = [8, 128], strides = [1, 1]} : vector<8x512xf32> to vector<8x128xf32>
    %54 = arith.negf %53 : vector<8x128xf32>
    %55 = math.exp %54 : vector<8x128xf32>
    %cst_20 = arith.constant 1.000000e+00 : f32
    %56 = vector.broadcast %cst_20 : f32 to vector<8x128xf32>
    %57 = arith.addf %56, %55 : vector<8x128xf32>
    %58 = arith.divf %56, %57 : vector<8x128xf32>
    %59 = vector.extract_strided_slice %46 {offsets = [0, 256], sizes = [8, 128], strides = [1, 1]} : vector<8x512xf32> to vector<8x128xf32>
    %60 = math.tanh %59 : vector<8x128xf32>
    %61 = vector.extract_strided_slice %46 {offsets = [0, 384], sizes = [8, 128], strides = [1, 1]} : vector<8x512xf32> to vector<8x128xf32>
    %62 = arith.negf %61 : vector<8x128xf32>
    %63 = math.exp %62 : vector<8x128xf32>
    %cst_21 = arith.constant 1.000000e+00 : f32
    %64 = vector.broadcast %cst_21 : f32 to vector<8x128xf32>
    %65 = arith.addf %64, %63 : vector<8x128xf32>
    %66 = arith.divf %64, %65 : vector<8x128xf32>
    %67 = arith.mulf %58, %38 : vector<8x128xf32>
    %68 = arith.mulf %52, %60 : vector<8x128xf32>
    %69 = arith.addf %67, %68 : vector<8x128xf32>
    %70 = math.tanh %69 : vector<8x128xf32>
    %71 = arith.mulf %66, %70 : vector<8x128xf32>
    %c2_i32 = arith.constant 2 : i32
    %c8_i32_22 = arith.constant 8 : i32
    %72 = arith.muli %c2_i32, %c8_i32_22 : i32
    %73 = tpu.assume_multiple %72, 8 : i32
    %74 = arith.index_cast %73 : i32 to index
    %c0_23 = arith.constant 0 : index
    %75 = vector.load %arg10[%74, %c0_23] : memref<64x512xf32, #tpu.memory_space<vmem>>, vector<8x512xf32>
    %cst_24 = arith.constant dense<0.000000e+00> : vector<8x512xf32>
    %76 = tpu.matmul %71, %7, %cst_24 {dimension_numbers = #tpu.dot_dimension_numbers<[1], [0], [0], [1], [0, 0, 1, 1], [], []>} : vector<8x128xf32>, vector<128x512xf32>, vector<8x512xf32> -> vector<8x512xf32>
    %77 = arith.addf %75, %76 : vector<8x512xf32>
    %78 = vector.extract_strided_slice %77 {offsets = [0, 0], sizes = [8, 128], strides = [1, 1]} : vector<8x512xf32> to vector<8x128xf32>
    %79 = arith.negf %78 : vector<8x128xf32>
    %80 = math.exp %79 : vector<8x128xf32>
    %cst_25 = arith.constant 1.000000e+00 : f32
    %81 = vector.broadcast %cst_25 : f32 to vector<8x128xf32>
    %82 = arith.addf %81, %80 : vector<8x128xf32>
    %83 = arith.divf %81, %82 : vector<8x128xf32>
    %84 = vector.extract_strided_slice %77 {offsets = [0, 128], sizes = [8, 128], strides = [1, 1]} : vector<8x512xf32> to vector<8x128xf32>
    %85 = arith.negf %84 : vector<8x128xf32>
    %86 = math.exp %85 : vector<8x128xf32>
    %cst_26 = arith.constant 1.000000e+00 : f32
    %87 = vector.broadcast %cst_26 : f32 to vector<8x128xf32>
    %88 = arith.addf %87, %86 : vector<8x128xf32>
    %89 = arith.divf %87, %88 : vector<8x128xf32>
    %90 = vector.extract_strided_slice %77 {offsets = [0, 256], sizes = [8, 128], strides = [1, 1]} : vector<8x512xf32> to vector<8x128xf32>
    %91 = math.tanh %90 : vector<8x128xf32>
    %92 = vector.extract_strided_slice %77 {offsets = [0, 384], sizes = [8, 128], strides = [1, 1]} : vector<8x512xf32> to vector<8x128xf32>
    %93 = arith.negf %92 : vector<8x128xf32>
    %94 = math.exp %93 : vector<8x128xf32>
    %cst_27 = arith.constant 1.000000e+00 : f32
    %95 = vector.broadcast %cst_27 : f32 to vector<8x128xf32>
    %96 = arith.addf %95, %94 : vector<8x128xf32>
    %97 = arith.divf %95, %96 : vector<8x128xf32>
    %98 = arith.mulf %89, %69 : vector<8x128xf32>
    %99 = arith.mulf %83, %91 : vector<8x128xf32>
    %100 = arith.addf %98, %99 : vector<8x128xf32>
    %101 = math.tanh %100 : vector<8x128xf32>
    %102 = arith.mulf %97, %101 : vector<8x128xf32>
    %c3_i32 = arith.constant 3 : i32
    %c8_i32_28 = arith.constant 8 : i32
    %103 = arith.muli %c3_i32, %c8_i32_28 : i32
    %104 = tpu.assume_multiple %103, 8 : i32
    %105 = arith.index_cast %104 : i32 to index
    %c0_29 = arith.constant 0 : index
    %106 = vector.load %arg10[%105, %c0_29] : memref<64x512xf32, #tpu.memory_space<vmem>>, vector<8x512xf32>
    %cst_30 = arith.constant dense<0.000000e+00> : vector<8x512xf32>
    %107 = tpu.matmul %102, %7, %cst_30 {dimension_numbers = #tpu.dot_dimension_numbers<[1], [0], [0], [1], [0, 0, 1, 1], [], []>} : vector<8x128xf32>, vector<128x512xf32>, vector<8x512xf32> -> vector<8x512xf32>
    %108 = arith.addf %106, %107 : vector<8x512xf32>
    %109 = vector.extract_strided_slice %108 {offsets = [0, 0], sizes = [8, 128], strides = [1, 1]} : vector<8x512xf32> to vector<8x128xf32>
    %110 = arith.negf %109 : vector<8x128xf32>
    %111 = math.exp %110 : vector<8x128xf32>
    %cst_31 = arith.constant 1.000000e+00 : f32
    %112 = vector.broadcast %cst_31 : f32 to vector<8x128xf32>
    %113 = arith.addf %112, %111 : vector<8x128xf32>
    %114 = arith.divf %112, %113 : vector<8x128xf32>
    %115 = vector.extract_strided_slice %108 {offsets = [0, 128], sizes = [8, 128], strides = [1, 1]} : vector<8x512xf32> to vector<8x128xf32>
    %116 = arith.negf %115 : vector<8x128xf32>
    %117 = math.exp %116 : vector<8x128xf32>
    %cst_32 = arith.constant 1.000000e+00 : f32
    %118 = vector.broadcast %cst_32 : f32 to vector<8x128xf32>
    %119 = arith.addf %118, %117 : vector<8x128xf32>
    %120 = arith.divf %118, %119 : vector<8x128xf32>
    %121 = vector.extract_strided_slice %108 {offsets = [0, 256], sizes = [8, 128], strides = [1, 1]} : vector<8x512xf32> to vector<8x128xf32>
    %122 = math.tanh %121 : vector<8x128xf32>
    %123 = vector.extract_strided_slice %108 {offsets = [0, 384], sizes = [8, 128], strides = [1, 1]} : vector<8x512xf32> to vector<8x128xf32>
    %124 = arith.negf %123 : vector<8x128xf32>
    %125 = math.exp %124 : vector<8x128xf32>
    %cst_33 = arith.constant 1.000000e+00 : f32
    %126 = vector.broadcast %cst_33 : f32 to vector<8x128xf32>
    %127 = arith.addf %126, %125 : vector<8x128xf32>
    %128 = arith.divf %126, %127 : vector<8x128xf32>
    %129 = arith.mulf %120, %100 : vector<8x128xf32>
    %130 = arith.mulf %114, %122 : vector<8x128xf32>
    %131 = arith.addf %129, %130 : vector<8x128xf32>
    %132 = math.tanh %131 : vector<8x128xf32>
    %133 = arith.mulf %128, %132 : vector<8x128xf32>
    %c4_i32 = arith.constant 4 : i32
    %c8_i32_34 = arith.constant 8 : i32
    %134 = arith.muli %c4_i32, %c8_i32_34 : i32
    %135 = tpu.assume_multiple %134, 8 : i32
    %136 = arith.index_cast %135 : i32 to index
    %c0_35 = arith.constant 0 : index
    %137 = vector.load %arg10[%136, %c0_35] : memref<64x512xf32, #tpu.memory_space<vmem>>, vector<8x512xf32>
    %cst_36 = arith.constant dense<0.000000e+00> : vector<8x512xf32>
    %138 = tpu.matmul %133, %7, %cst_36 {dimension_numbers = #tpu.dot_dimension_numbers<[1], [0], [0], [1], [0, 0, 1, 1], [], []>} : vector<8x128xf32>, vector<128x512xf32>, vector<8x512xf32> -> vector<8x512xf32>
    %139 = arith.addf %137, %138 : vector<8x512xf32>
    %140 = vector.extract_strided_slice %139 {offsets = [0, 0], sizes = [8, 128], strides = [1, 1]} : vector<8x512xf32> to vector<8x128xf32>
    %141 = arith.negf %140 : vector<8x128xf32>
    %142 = math.exp %141 : vector<8x128xf32>
    %cst_37 = arith.constant 1.000000e+00 : f32
    %143 = vector.broadcast %cst_37 : f32 to vector<8x128xf32>
    %144 = arith.addf %143, %142 : vector<8x128xf32>
    %145 = arith.divf %143, %144 : vector<8x128xf32>
    %146 = vector.extract_strided_slice %139 {offsets = [0, 128], sizes = [8, 128], strides = [1, 1]} : vector<8x512xf32> to vector<8x128xf32>
    %147 = arith.negf %146 : vector<8x128xf32>
    %148 = math.exp %147 : vector<8x128xf32>
    %cst_38 = arith.constant 1.000000e+00 : f32
    %149 = vector.broadcast %cst_38 : f32 to vector<8x128xf32>
    %150 = arith.addf %149, %148 : vector<8x128xf32>
    %151 = arith.divf %149, %150 : vector<8x128xf32>
    %152 = vector.extract_strided_slice %139 {offsets = [0, 256], sizes = [8, 128], strides = [1, 1]} : vector<8x512xf32> to vector<8x128xf32>
    %153 = math.tanh %152 : vector<8x128xf32>
    %154 = vector.extract_strided_slice %139 {offsets = [0, 384], sizes = [8, 128], strides = [1, 1]} : vector<8x512xf32> to vector<8x128xf32>
    %155 = arith.negf %154 : vector<8x128xf32>
    %156 = math.exp %155 : vector<8x128xf32>
    %cst_39 = arith.constant 1.000000e+00 : f32
    %157 = vector.broadcast %cst_39 : f32 to vector<8x128xf32>
    %158 = arith.addf %157, %156 : vector<8x128xf32>
    %159 = arith.divf %157, %158 : vector<8x128xf32>
    %160 = arith.mulf %151, %131 : vector<8x128xf32>
    %161 = arith.mulf %145, %153 : vector<8x128xf32>
    %162 = arith.addf %160, %161 : vector<8x128xf32>
    %163 = math.tanh %162 : vector<8x128xf32>
    %164 = arith.mulf %159, %163 : vector<8x128xf32>
    %c5_i32 = arith.constant 5 : i32
    %c8_i32_40 = arith.constant 8 : i32
    %165 = arith.muli %c5_i32, %c8_i32_40 : i32
    %166 = tpu.assume_multiple %165, 8 : i32
    %167 = arith.index_cast %166 : i32 to index
    %c0_41 = arith.constant 0 : index
    %168 = vector.load %arg10[%167, %c0_41] : memref<64x512xf32, #tpu.memory_space<vmem>>, vector<8x512xf32>
    %cst_42 = arith.constant dense<0.000000e+00> : vector<8x512xf32>
    %169 = tpu.matmul %164, %7, %cst_42 {dimension_numbers = #tpu.dot_dimension_numbers<[1], [0], [0], [1], [0, 0, 1, 1], [], []>} : vector<8x128xf32>, vector<128x512xf32>, vector<8x512xf32> -> vector<8x512xf32>
    %170 = arith.addf %168, %169 : vector<8x512xf32>
    %171 = vector.extract_strided_slice %170 {offsets = [0, 0], sizes = [8, 128], strides = [1, 1]} : vector<8x512xf32> to vector<8x128xf32>
    %172 = arith.negf %171 : vector<8x128xf32>
    %173 = math.exp %172 : vector<8x128xf32>
    %cst_43 = arith.constant 1.000000e+00 : f32
    %174 = vector.broadcast %cst_43 : f32 to vector<8x128xf32>
    %175 = arith.addf %174, %173 : vector<8x128xf32>
    %176 = arith.divf %174, %175 : vector<8x128xf32>
    %177 = vector.extract_strided_slice %170 {offsets = [0, 128], sizes = [8, 128], strides = [1, 1]} : vector<8x512xf32> to vector<8x128xf32>
    %178 = arith.negf %177 : vector<8x128xf32>
    %179 = math.exp %178 : vector<8x128xf32>
    %cst_44 = arith.constant 1.000000e+00 : f32
    %180 = vector.broadcast %cst_44 : f32 to vector<8x128xf32>
    %181 = arith.addf %180, %179 : vector<8x128xf32>
    %182 = arith.divf %180, %181 : vector<8x128xf32>
    %183 = vector.extract_strided_slice %170 {offsets = [0, 256], sizes = [8, 128], strides = [1, 1]} : vector<8x512xf32> to vector<8x128xf32>
    %184 = math.tanh %183 : vector<8x128xf32>
    %185 = vector.extract_strided_slice %170 {offsets = [0, 384], sizes = [8, 128], strides = [1, 1]} : vector<8x512xf32> to vector<8x128xf32>
    %186 = arith.negf %185 : vector<8x128xf32>
    %187 = math.exp %186 : vector<8x128xf32>
    %cst_45 = arith.constant 1.000000e+00 : f32
    %188 = vector.broadcast %cst_45 : f32 to vector<8x128xf32>
    %189 = arith.addf %188, %187 : vector<8x128xf32>
    %190 = arith.divf %188, %189 : vector<8x128xf32>
    %191 = arith.mulf %182, %162 : vector<8x128xf32>
    %192 = arith.mulf %176, %184 : vector<8x128xf32>
    %193 = arith.addf %191, %192 : vector<8x128xf32>
    %194 = math.tanh %193 : vector<8x128xf32>
    %195 = arith.mulf %190, %194 : vector<8x128xf32>
    %c6_i32 = arith.constant 6 : i32
    %c8_i32_46 = arith.constant 8 : i32
    %196 = arith.muli %c6_i32, %c8_i32_46 : i32
    %197 = tpu.assume_multiple %196, 8 : i32
    %198 = arith.index_cast %197 : i32 to index
    %c0_47 = arith.constant 0 : index
    %199 = vector.load %arg10[%198, %c0_47] : memref<64x512xf32, #tpu.memory_space<vmem>>, vector<8x512xf32>
    %cst_48 = arith.constant dense<0.000000e+00> : vector<8x512xf32>
    %200 = tpu.matmul %195, %7, %cst_48 {dimension_numbers = #tpu.dot_dimension_numbers<[1], [0], [0], [1], [0, 0, 1, 1], [], []>} : vector<8x128xf32>, vector<128x512xf32>, vector<8x512xf32> -> vector<8x512xf32>
    %201 = arith.addf %199, %200 : vector<8x512xf32>
    %202 = vector.extract_strided_slice %201 {offsets = [0, 0], sizes = [8, 128], strides = [1, 1]} : vector<8x512xf32> to vector<8x128xf32>
    %203 = arith.negf %202 : vector<8x128xf32>
    %204 = math.exp %203 : vector<8x128xf32>
    %cst_49 = arith.constant 1.000000e+00 : f32
    %205 = vector.broadcast %cst_49 : f32 to vector<8x128xf32>
    %206 = arith.addf %205, %204 : vector<8x128xf32>
    %207 = arith.divf %205, %206 : vector<8x128xf32>
    %208 = vector.extract_strided_slice %201 {offsets = [0, 128], sizes = [8, 128], strides = [1, 1]} : vector<8x512xf32> to vector<8x128xf32>
    %209 = arith.negf %208 : vector<8x128xf32>
    %210 = math.exp %209 : vector<8x128xf32>
    %cst_50 = arith.constant 1.000000e+00 : f32
    %211 = vector.broadcast %cst_50 : f32 to vector<8x128xf32>
    %212 = arith.addf %211, %210 : vector<8x128xf32>
    %213 = arith.divf %211, %212 : vector<8x128xf32>
    %214 = vector.extract_strided_slice %201 {offsets = [0, 256], sizes = [8, 128], strides = [1, 1]} : vector<8x512xf32> to vector<8x128xf32>
    %215 = math.tanh %214 : vector<8x128xf32>
    %216 = vector.extract_strided_slice %201 {offsets = [0, 384], sizes = [8, 128], strides = [1, 1]} : vector<8x512xf32> to vector<8x128xf32>
    %217 = arith.negf %216 : vector<8x128xf32>
    %218 = math.exp %217 : vector<8x128xf32>
    %cst_51 = arith.constant 1.000000e+00 : f32
    %219 = vector.broadcast %cst_51 : f32 to vector<8x128xf32>
    %220 = arith.addf %219, %218 : vector<8x128xf32>
    %221 = arith.divf %219, %220 : vector<8x128xf32>
    %222 = arith.mulf %213, %193 : vector<8x128xf32>
    %223 = arith.mulf %207, %215 : vector<8x128xf32>
    %224 = arith.addf %222, %223 : vector<8x128xf32>
    %225 = math.tanh %224 : vector<8x128xf32>
    %226 = arith.mulf %221, %225 : vector<8x128xf32>
    %c7_i32 = arith.constant 7 : i32
    %c8_i32_52 = arith.constant 8 : i32
    %227 = arith.muli %c7_i32, %c8_i32_52 : i32
    %228 = tpu.assume_multiple %227, 8 : i32
    %229 = arith.index_cast %228 : i32 to index
    %c0_53 = arith.constant 0 : index
    %230 = vector.load %arg10[%229, %c0_53] : memref<64x512xf32, #tpu.memory_space<vmem>>, vector<8x512xf32>
    %cst_54 = arith.constant dense<0.000000e+00> : vector<8x512xf32>
    %231 = tpu.matmul %226, %7, %cst_54 {dimension_numbers = #tpu.dot_dimension_numbers<[1], [0], [0], [1], [0, 0, 1, 1], [], []>} : vector<8x128xf32>, vector<128x512xf32>, vector<8x512xf32> -> vector<8x512xf32>
    %232 = arith.addf %230, %231 : vector<8x512xf32>
    %233 = vector.extract_strided_slice %232 {offsets = [0, 0], sizes = [8, 128], strides = [1, 1]} : vector<8x512xf32> to vector<8x128xf32>
    %234 = arith.negf %233 : vector<8x128xf32>
    %235 = math.exp %234 : vector<8x128xf32>
    %cst_55 = arith.constant 1.000000e+00 : f32
    %236 = vector.broadcast %cst_55 : f32 to vector<8x128xf32>
    %237 = arith.addf %236, %235 : vector<8x128xf32>
    %238 = arith.divf %236, %237 : vector<8x128xf32>
    %239 = vector.extract_strided_slice %232 {offsets = [0, 128], sizes = [8, 128], strides = [1, 1]} : vector<8x512xf32> to vector<8x128xf32>
    %240 = arith.negf %239 : vector<8x128xf32>
    %241 = math.exp %240 : vector<8x128xf32>
    %cst_56 = arith.constant 1.000000e+00 : f32
    %242 = vector.broadcast %cst_56 : f32 to vector<8x128xf32>
    %243 = arith.addf %242, %241 : vector<8x128xf32>
    %244 = arith.divf %242, %243 : vector<8x128xf32>
    %245 = vector.extract_strided_slice %232 {offsets = [0, 256], sizes = [8, 128], strides = [1, 1]} : vector<8x512xf32> to vector<8x128xf32>
    %246 = math.tanh %245 : vector<8x128xf32>
    %247 = vector.extract_strided_slice %232 {offsets = [0, 384], sizes = [8, 128], strides = [1, 1]} : vector<8x512xf32> to vector<8x128xf32>
    %248 = arith.negf %247 : vector<8x128xf32>
    %249 = math.exp %248 : vector<8x128xf32>
    %cst_57 = arith.constant 1.000000e+00 : f32
    %250 = vector.broadcast %cst_57 : f32 to vector<8x128xf32>
    %251 = arith.addf %250, %249 : vector<8x128xf32>
    %252 = arith.divf %250, %251 : vector<8x128xf32>
    %253 = arith.mulf %244, %224 : vector<8x128xf32>
    %254 = arith.mulf %238, %246 : vector<8x128xf32>
    %255 = arith.addf %253, %254 : vector<8x128xf32>
    %256 = math.tanh %255 : vector<8x128xf32>
    %257 = arith.mulf %252, %256 : vector<8x128xf32>
    %c8_i32_58 = arith.constant 8 : i32
    %c0_59 = arith.constant 0 : index
    %c0_60 = arith.constant 0 : index
    %258 = vector.load %arg5[%c0_59, %c0_60] : memref<128x128xf32, #tpu.memory_space<vmem>>, vector<128x128xf32>
    %cst_61 = arith.constant dense<0.000000e+00> : vector<8x128xf32>
    %259 = tpu.matmul %257, %258, %cst_61 {dimension_numbers = #tpu.dot_dimension_numbers<[1], [0], [0], [1], [0, 0, 1, 1], [], []>} : vector<8x128xf32>, vector<128x128xf32>, vector<8x128xf32> -> vector<8x128xf32>
    %c0_62 = arith.constant 0 : index
    %c0_63 = arith.constant 0 : index
    %260 = vector.load %arg6[%c0_62, %c0_63] : memref<1x128xf32, #tpu.memory_space<vmem>>, vector<1x128xf32>
    %261 = vector.broadcast %260 : vector<1x128xf32> to vector<8x128xf32>
    %262 = arith.addf %259, %261 : vector<8x128xf32>
    %c0_64 = arith.constant 0 : index
    %c0_65 = arith.constant 0 : index
    %263 = vector.load %arg7[%c0_64, %c0_65] : memref<8x128xf32, #tpu.memory_space<vmem>>, vector<8x128xf32>
    tpu.vector_store %arg7[%c0_64, %c0_65], %262 {strides = array<i32>} : memref<8x128xf32, #tpu.memory_space<vmem>>, vector<8x128xf32>,
    %c0_66 = arith.constant 0 : index
    %c0_67 = arith.constant 0 : index
    %264 = vector.load %arg8[%c0_66, %c0_67] : memref<8x128xf32, #tpu.memory_space<vmem>>, vector<8x128xf32>
    tpu.vector_store %arg8[%c0_66, %c0_67], %257 {strides = array<i32>} : memref<8x128xf32, #tpu.memory_space<vmem>>, vector<8x128xf32>,
    %c0_68 = arith.constant 0 : index
    %c0_69 = arith.constant 0 : index
    %265 = vector.load %arg9[%c0_68, %c0_69] : memref<8x128xf32, #tpu.memory_space<vmem>>, vector<8x128xf32>
    tpu.vector_store %arg9[%c0_68, %c0_69], %255 {strides = array<i32>} : memref<8x128xf32, #tpu.memory_space<vmem>>, vector<8x128xf32>,
    return
  }
  func.func @transform_0(%arg0: i32) -> (i32, i32) {
    %c0_i32 = arith.constant 0 : i32
    %c0_i32_0 = arith.constant 0 : i32
    %c0_i32_1 = arith.constant 0 : i32
    return %c0_i32, %c0_i32_0 : i32, i32
  }
  func.func @transform_1(%arg0: i32) -> (i32, i32) {
    %c0_i32 = arith.constant 0 : i32
    %c0_i32_0 = arith.constant 0 : i32
    %c0_i32_1 = arith.constant 0 : i32
    return %c0_i32, %c0_i32_0 : i32, i32
  }
  func.func @transform_2(%arg0: i32) -> (i32, i32) {
    %c0_i32 = arith.constant 0 : i32
    %c0_i32_0 = arith.constant 0 : i32
    %c0_i32_1 = arith.constant 0 : i32
    return %c0_i32, %c0_i32_0 : i32, i32
  }
  func.func @transform_3(%arg0: i32) -> (i32, i32) {
    %c0_i32 = arith.constant 0 : i32
    %c0_i32_0 = arith.constant 0 : i32
    %c0_i32_1 = arith.constant 0 : i32
    return %c0_i32, %c0_i32_0 : i32, i32
  }
  func.func @transform_4(%arg0: i32) -> (i32, i32) {
    %c0_i32 = arith.constant 0 : i32
    %c0_i32_0 = arith.constant 0 : i32
    %c0_i32_1 = arith.constant 0 : i32
    return %c0_i32, %c0_i32_0 : i32, i32
  }
  func.func @transform_5(%arg0: i32) -> (i32, i32) {
    %c0_i32 = arith.constant 0 : i32
    %c0_i32_0 = arith.constant 0 : i32
    %c0_i32_1 = arith.constant 0 : i32
    return %c0_i32, %c0_i32_0 : i32, i32
  }
  func.func @transform_6(%arg0: i32) -> (i32, i32) {
    %c0_i32 = arith.constant 0 : i32
    %c0_i32_0 = arith.constant 0 : i32
    %c0_i32_1 = arith.constant 0 : i32
    return %c0_i32, %c0_i32_0 : i32, i32
  }
  func.func @transform_7(%arg0: i32) -> (i32, i32) {
    %c0_i32 = arith.constant 0 : i32
    %c0_i32_0 = arith.constant 0 : i32
    %c0_i32_1 = arith.constant 0 : i32
    return %c0_i32, %c0_i32_0 : i32, i32
  }
  func.func @transform_8(%arg0: i32) -> (i32, i32) {
    %c0_i32 = arith.constant 0 : i32
    %c0_i32_0 = arith.constant 0 : i32
    %c0_i32_1 = arith.constant 0 : i32
    return %c0_i32, %c0_i32_0 : i32, i32
  }
}

</mosaic_0001>

<llo_original>
// kernel: char_lstm_forward.1
$region0: #{char_lstm_forward.1}
  #allocation0 [shape = 'u32[]', space=smem, size = 0x4, offset = 0x4, fixed_abs, tag = 'smem constant byte address 0x4 - core index']
  #allocation1 [shape = 'u32[144,128]{1,0:T(1,128)}', space=vmem, size = 0x12000, scoped, tag = 'internal scratch']
  #allocation2 [shape = 'f32[64,512]{1,0:T(8,128)}', space=vmem, size = 0x20000, scoped, tag = 'scratch operand']
  %s0 = inlined_call_operand.vmem [shape: f32[64,64], index: 0, kind: input, shape index: {}]
  %s1 = inlined_call_operand.vmem [shape: f32[64,512], index: 1, kind: input, shape index: {}]
  %s2 = inlined_call_operand.vmem [shape: f32[128,512], index: 2, kind: input, shape index: {}]
  %s3 = inlined_call_operand.vmem [shape: f32[1,512], index: 3, kind: input, shape index: {}]
  %s4 = inlined_call_operand.vmem [shape: f32[128,128], index: 4, kind: input, shape index: {}]
  %s5 = inlined_call_operand.vmem [shape: f32[1,128], index: 5, kind: input, shape index: {}]
  %s6 = inlined_call_operand.vmem [shape: f32[8,128], index: 6, kind: output, shape index: {0}]
  %s7 = inlined_call_operand.vmem [shape: f32[8,128], index: 7, kind: output, shape index: {1}]
  %s8 = inlined_call_operand.vmem [shape: f32[8,128], index: 8, kind: output, shape index: {2}]
  %9 = xla_tuple %s6, %s7, %s8
  %s10 = sld [smem:[#allocation0]]
  $region50: #{char_lstm_forward.1} parent=0
    _
  %s12 = ssub.s32 1, %s10
  %s13 = scalar_select 0, %s12, %s10
  // Predicated region
  $region2: #{char_lstm_forward.1} parent=0 // pred_check
    _
  $region3: #{char_lstm_forward.1} parent=0 // pred_check_branch
    %15 = sbr.rel (0) target = $region5
  $region4: #{char_lstm_forward.1} parent=0 // pred_region
    _
  $region5: #{char_lstm_forward.1} parent=0 // pred_fallthru
    _
  // Predicated region
  $region6: #{char_lstm_forward.1} parent=0 // pred_check
    _
  $region7: #{char_lstm_forward.1} parent=0 // pred_check_branch
    %17 = sbr.rel (0) target = $region9
  $region8: #{char_lstm_forward.1} parent=0 // pred_region
    _
  $region9: #{char_lstm_forward.1} parent=0 // pred_fallthru
    _
  // Predicated region
  $region10: #{char_lstm_forward.1} parent=0 // pred_check
    _
  $region11: #{char_lstm_forward.1} parent=0 // pred_check_branch
    %19 = sbr.rel (0) target = $region13
  $region12: #{char_lstm_forward.1} parent=0 // pred_region
    _
  $region13: #{char_lstm_forward.1} parent=0 // pred_fallthru
    _
  // Predicated region
  $region14: #{char_lstm_forward.1} parent=0 // pred_check
    _
  $region15: #{char_lstm_forward.1} parent=0 // pred_check_branch
    %21 = sbr.rel (0) target = $region17
  $region16: #{char_lstm_forward.1} parent=0 // pred_region
    _
  $region17: #{char_lstm_forward.1} parent=0 // pred_fallthru
    _
  // Predicated region
  $region18: #{char_lstm_forward.1} parent=0 // pred_check
    _
  $region19: #{char_lstm_forward.1} parent=0 // pred_check_branch
    %23 = sbr.rel (0) target = $region21
  $region20: #{char_lstm_forward.1} parent=0 // pred_region
    _
  $region21: #{char_lstm_forward.1} parent=0 // pred_fallthru
    _
  // Predicated region
  $region22: #{char_lstm_forward.1} parent=0 // pred_check
    _
  $region23: #{char_lstm_forward.1} parent=0 // pred_check_branch
    %25 = sbr.rel (0) target = $region25
  $region24: #{char_lstm_forward.1} parent=0 // pred_region
    _
  $region25: #{char_lstm_forward.1} parent=0 // pred_fallthru
    _
  %v26 = vld [vmem:[%s0] sm:$0xff]
  %v27 = vld [vmem:[%s0 + $0x8] sm:$0xff]
  %v28 = vld [vmem:[%s0 + $0x10] sm:$0xff]
  %v29 = vld [vmem:[%s0 + $0x18] sm:$0xff]
  %v30 = vld [vmem:[%s0 + $0x20] sm:$0xff]
  %v31 = vld [vmem:[%s0 + $0x28] sm:$0xff]
  %v32 = vld [vmem:[%s0 + $0x30] sm:$0xff]
  %v33 = vld [vmem:[%s0 + $0x38] sm:$0xff]
  %v34 = vld [vmem:[%s1] sm:$0xff]
  %v35 = vld [vmem:[%s1 + $0x8] sm:$0xff]
  %v36 = vld [vmem:[%s1 + $0x10] sm:$0xff]
  %v37 = vld [vmem:[%s1 + $0x18] sm:$0xff]
  %v38 = vld [vmem:[%s1 + $0x20] sm:$0xff]
  %v39 = vld [vmem:[%s1 + $0x28] sm:$0xff]
  %v40 = vld [vmem:[%s1 + $0x30] sm:$0xff]
  %v41 = vld [vmem:[%s1 + $0x38] sm:$0xff]
  %v42 = vld [vmem:[%s1 + $0x40] sm:$0xff]
  %v43 = vld [vmem:[%s1 + $0x48] sm:$0xff]
  %v44 = vld [vmem:[%s1 + $0x50] sm:$0xff]
  %v45 = vld [vmem:[%s1 + $0x58] sm:$0xff]
  %v46 = vld [vmem:[%s1 + $0x60] sm:$0xff]
  %v47 = vld [vmem:[%s1 + $0x68] sm:$0xff]
  %v48 = vld [vmem:[%s1 + $0x70] sm:$0xff]
  %v49 = vld [vmem:[%s1 + $0x78] sm:$0xff]
  %v50 = vld [vmem:[%s1 + $0x80] sm:$0xff]
  %v51 = vld [vmem:[%s1 + $0x88] sm:$0xff]
  %v52 = vld [vmem:[%s1 + $0x90] sm:$0xff]
  %v53 = vld [vmem:[%s1 + $0x98] sm:$0xff]
  %v54 = vld [vmem:[%s1 + $0xa0] sm:$0xff]
  %v55 = vld [vmem:[%s1 + $0xa8] sm:$0xff]
  %v56 = vld [vmem:[%s1 + $0xb0] sm:$0xff]
  %v57 = vld [vmem:[%s1 + $0xb8] sm:$0xff]
  %v58 = vld [vmem:[%s1 + $0xc0] sm:$0xff]
  %v59 = vld [vmem:[%s1 + $0xc8] sm:$0xff]
  %v60 = vld [vmem:[%s1 + $0xd0] sm:$0xff]
  %v61 = vld [vmem:[%s1 + $0xd8] sm:$0xff]
  %v62 = vld [vmem:[%s1 + $0xe0] sm:$0xff]
  %v63 = vld [vmem:[%s1 + $0xe8] sm:$0xff]
  %v64 = vld [vmem:[%s1 + $0xf0] sm:$0xff]
  %v65 = vld [vmem:[%s1 + $0xf8] sm:$0xff]
  %v66 = vld [vmem:[%s3] sm:$0xf]
  %v68 = vlaneseq
  %v69 = vshrl.u32 %v68, 7
  %v70 = vsub.s32 0, %v69
  %v71 = vrot.slane %v66, %v70
  %v72 = vlaneseq
  %v73 = vshrl.u32 %v72, 7
  %v74 = vsub.s32 1, %v73
  %v75 = vrot.slane %v66, %v74
  %v76 = vlaneseq
  %v77 = vshrl.u32 %v76, 7
  %v78 = vsub.s32 2, %v77
  %v79 = vrot.slane %v66, %v78
  %v80 = vlaneseq
  %v81 = vshrl.u32 %v80, 7
  %v82 = vsub.s32 3, %v81
  %v83 = vrot.slane %v66, %v82
  %vm88 = vcmask 523264
  %v90 = vsel %vm88, %v26, 0
  %v93 = vsel %vm88, %v27, 0
  %v96 = vsel %vm88, %v28, 0
  %v99 = vsel %vm88, %v29, 0
  %v102 = vsel %vm88, %v30, 0
  %v105 = vsel %vm88, %v31, 0
  %v108 = vsel %vm88, %v32, 0
  %v111 = vsel %vm88, %v33, 0
  %113 = vmatprep.subr.mxu0 %v35
  %114 = vmatpush1.msra.mxu0 %v34
  %115 = vmatprep.subr.mxu0 %v39
  %116 = vmatpush1.msra.mxu0 %v38
  %117 = vmatprep.subr.mxu0 %v43
  %118 = vmatpush1.msra.mxu0 %v42
  %119 = vmatprep.subr.mxu0 %v47
  %120 = vmatpush1.msra.mxu0 %v46
  %121 = vmatprep.subr.mxu0 %v51
  %122 = vmatpush1.msra.mxu0 %v50
  %123 = vmatprep.subr.mxu0 %v55
  %124 = vmatpush1.msra.mxu0 %v54
  %125 = vmatprep.subr.mxu0 %v59
  %126 = vmatpush1.msra.mxu0 %v58
  %127 = vmatprep.subr.mxu0 %v63
  %128 = vmatpush1.msra.mxu0 %v62
  %129 = vmatprep.subr.mxu0 0.0
  %130 = vmatpush1.msra.mxu0 0.0
  %131 = vmatprep.subr.mxu0 0.0
  %132 = vmatpush1.msra.mxu0 0.0
  %133 = vmatprep.subr.mxu0 0.0
  %134 = vmatpush1.msra.mxu0 0.0
  %135 = vmatprep.subr.mxu0 0.0
  %136 = vmatpush1.msra.mxu0 0.0
  %137 = vmatprep.subr.mxu0 0.0
  %138 = vmatpush1.msra.mxu0 0.0
  %139 = vmatprep.subr.mxu0 0.0
  %140 = vmatpush1.msra.mxu0 0.0
  %141 = vmatprep.subr.mxu0 0.0
  %142 = vmatpush1.msra.mxu0 0.0
  %143 = vmatprep.subr.mxu0 0.0
  %144 = vmatpush1.msra.mxu0 0.0
  %145 = vmatprep.subr.mxu0 0.0
  %146 = vmatpush1.msra.mxu0 0.0
  %147 = vmatprep.subr.mxu0 0.0
  %148 = vmatpush1.msra.mxu0 0.0
  %149 = vmatprep.subr.mxu0 0.0
  %150 = vmatpush1.msra.mxu0 0.0
  %151 = vmatprep.subr.mxu0 0.0
  %152 = vmatpush1.msra.mxu0 0.0
  %153 = vmatprep.subr.mxu0 0.0
  %154 = vmatpush1.msra.mxu0 0.0
  %155 = vmatprep.subr.mxu0 0.0
  %156 = vmatpush1.msra.mxu0 0.0
  %157 = vmatprep.subr.mxu0 0.0
  %158 = vmatpush1.msra.mxu0 0.0
  %159 = vmatprep.subr.mxu0 0.0
  %160 = vmatpush1.msra.mxu0 0.0
  %161 = vmatprep.subr.mxu0 0.0
  %162 = vmatpush1.msra.mxu0 0.0
  %163 = vmatprep.subr.mxu0 0.0
  %164 = vmatpush1.msra.mxu0 0.0
  %165 = vmatprep.subr.mxu0 0.0
  %166 = vmatpush1.msra.mxu0 0.0
  %167 = vmatprep.subr.mxu0 0.0
  %168 = vmatpush1.msra.mxu0 0.0
  %169 = vmatprep.subr.mxu0 0.0
  %170 = vmatpush1.msra.mxu0 0.0
  %171 = vmatprep.subr.mxu0 0.0
  %172 = vmatpush1.msra.mxu0 0.0
  %173 = vmatprep.subr.mxu0 0.0
  %174 = vmatpush1.msra.mxu0 0.0
  %175 = vmatprep.subr.mxu0 0.0
  %176 = vmatpush1.msra.mxu0 0.0
  %177 = vmatprep.mubr.f32.mxu0 0.0
  %178 = vmatmul.mubr.f32.gmra.mrb[0].mxu0 %v90
  %v179 = vpop.f32.mrb[0].mxu0
  %v180 = vadd.f32 %v71, %v179
  %v181 = vpop.f32.mrb[0].mxu0
  %v182 = vadd.f32 %v75, %v181
  %183 = vmatprep.mubr.f32.mxu0 0.0
  %184 = vmatmul.mubr.f32.gmra.mrb[0].mxu0 %v93
  %v185 = vpop.f32.mrb[0].mxu0
  %v186 = vadd.f32 %v71, %v185
  %v187 = vpop.f32.mrb[0].mxu0
  %v188 = vadd.f32 %v75, %v187
  %189 = vmatprep.mubr.f32.mxu0 0.0
  %190 = vmatmul.mubr.f32.gmra.mrb[0].mxu0 %v96
  %v191 = vpop.f32.mrb[0].mxu0
  %v192 = vadd.f32 %v71, %v191
  %v193 = vpop.f32.mrb[0].mxu0
  %v194 = vadd.f32 %v75, %v193
  %195 = vmatprep.mubr.f32.mxu0 0.0
  %196 = vmatmul.mubr.f32.gmra.mrb[0].mxu0 %v99
  %v197 = vpop.f32.mrb[0].mxu0
  %v198 = vadd.f32 %v71, %v197
  %v199 = vpop.f32.mrb[0].mxu0
  %v200 = vadd.f32 %v75, %v199
  %201 = vmatprep.mubr.f32.mxu0 0.0
  %202 = vmatmul.mubr.f32.gmra.mrb[0].mxu0 %v102
  %v203 = vpop.f32.mrb[0].mxu0
  %v204 = vadd.f32 %v71, %v203
  %v205 = vpop.f32.mrb[0].mxu0
  %v206 = vadd.f32 %v75, %v205
  %207 = vmatprep.mubr.f32.mxu0 0.0
  %208 = vmatmul.mubr.f32.gmra.mrb[0].mxu0 %v105
  %v209 = vpop.f32.mrb[0].mxu0
  %v210 = vadd.f32 %v71, %v209
  %v211 = vpop.f32.mrb[0].mxu0
  %v212 = vadd.f32 %v75, %v211
  %213 = vmatprep.mubr.f32.mxu0 0.0
  %214 = vmatmul.mubr.f32.gmra.mrb[0].mxu0 %v108
  %v215 = vpop.f32.mrb[0].mxu0
  %v216 = vadd.f32 %v71, %v215
  %v217 = vpop.f32.mrb[0].mxu0
  %v218 = vadd.f32 %v75, %v217
  %219 = vmatprep.mubr.f32.mxu0 0.0
  %220 = vmatmul.mubr.f32.gmra.mrb[0].mxu0 %v111
  %v221 = vpop.f32.mrb[0].mxu0
  %v222 = vadd.f32 %v71, %v221
  %v223 = vpop.f32.mrb[0].mxu0
  %v224 = vadd.f32 %v75, %v223
  %225 = vdwg.mxu0
  %226 = vmatprep.subr.mxu0 %v37
  %227 = vmatpush1.msra.mxu0 %v36
  %228 = vmatprep.subr.mxu0 %v41
  %229 = vmatpush1.msra.mxu0 %v40
  %230 = vmatprep.subr.mxu0 %v45
  %231 = vmatpush1.msra.mxu0 %v44
  %232 = vmatprep.subr.mxu0 %v49
  %233 = vmatpush1.msra.mxu0 %v48
  %234 = vmatprep.subr.mxu0 %v53
  %235 = vmatpush1.msra.mxu0 %v52
  %236 = vmatprep.subr.mxu0 %v57
  %237 = vmatpush1.msra.mxu0 %v56
  %238 = vmatprep.subr.mxu0 %v61
  %239 = vmatpush1.msra.mxu0 %v60
  %240 = vmatprep.subr.mxu0 %v65
  %241 = vmatpush1.msra.mxu0 %v64
  %242 = vmatprep.subr.mxu0 0.0
  %243 = vmatpush1.msra.mxu0 0.0
  %244 = vmatprep.subr.mxu0 0.0
  %245 = vmatpush1.msra.mxu0 0.0
  %246 = vmatprep.subr.mxu0 0.0
  %247 = vmatpush1.msra.mxu0 0.0
  %248 = vmatprep.subr.mxu0 0.0
  %249 = vmatpush1.msra.mxu0 0.0
  %250 = vmatprep.subr.mxu0 0.0
  %251 = vmatpush1.msra.mxu0 0.0
  %252 = vmatprep.subr.mxu0 0.0
  %253 = vmatpush1.msra.mxu0 0.0
  %254 = vmatprep.subr.mxu0 0.0
  %255 = vmatpush1.msra.mxu0 0.0
  %256 = vmatprep.subr.mxu0 0.0
  %257 = vmatpush1.msra.mxu0 0.0
  %258 = vmatprep.subr.mxu0 0.0
  %259 = vmatpush1.msra.mxu0 0.0
  %260 = vmatprep.subr.mxu0 0.0
  %261 = vmatpush1.msra.mxu0 0.0
  %262 = vmatprep.subr.mxu0 0.0
  %263 = vmatpush1.msra.mxu0 0.0
  %264 = vmatprep.subr.mxu0 0.0
  %265 = vmatpush1.msra.mxu0 0.0
  %266 = vmatprep.subr.mxu0 0.0
  %267 = vmatpush1.msra.mxu0 0.0
  %268 = vmatprep.subr.mxu0 0.0
  %269 = vmatpush1.msra.mxu0 0.0
  %270 = vmatprep.subr.mxu0 0.0
  %271 = vmatpush1.msra.mxu0 0.0
  %272 = vmatprep.subr.mxu0 0.0
  %273 = vmatpush1.msra.mxu0 0.0
  %274 = vmatprep.subr.mxu0 0.0
  %275 = vmatpush1.msra.mxu0 0.0
  %276 = vmatprep.subr.mxu0 0.0
  %277 = vmatpush1.msra.mxu0 0.0
  %278 = vmatprep.subr.mxu0 0.0
  %279 = vmatpush1.msra.mxu0 0.0
  %280 = vmatprep.subr.mxu0 0.0
  %281 = vmatpush1.msra.mxu0 0.0
  %282 = vmatprep.subr.mxu0 0.0
  %283 = vmatpush1.msra.mxu0 0.0
  %284 = vmatprep.subr.mxu0 0.0
  %285 = vmatpush1.msra.mxu0 0.0
  %286 = vmatprep.subr.mxu0 0.0
  %287 = vmatpush1.msra.mxu0 0.0
  %288 = vmatprep.subr.mxu0 0.0
  %289 = vmatpush1.msra.mxu0 0.0
  %290 = vmatprep.mubr.f32.mxu0 0.0
  %291 = vmatmul.mubr.f32.gmra.mrb[0].mxu0 %v90
  %v292 = vpop.f32.mrb[0].mxu0
  %v293 = vadd.f32 %v79, %v292
  %v294 = vpop.f32.mrb[0].mxu0
  %v295 = vadd.f32 %v83, %v294
  %296 = vmatprep.mubr.f32.mxu0 0.0
  %297 = vmatmul.mubr.f32.gmra.mrb[0].mxu0 %v93
  %v298 = vpop.f32.mrb[0].mxu0
  %v299 = vadd.f32 %v79, %v298
  %v300 = vpop.f32.mrb[0].mxu0
  %v301 = vadd.f32 %v83, %v300
  %302 = vmatprep.mubr.f32.mxu0 0.0
  %303 = vmatmul.mubr.f32.gmra.mrb[0].mxu0 %v96
  %v304 = vpop.f32.mrb[0].mxu0
  %v305 = vadd.f32 %v79, %v304
  %v306 = vpop.f32.mrb[0].mxu0
  %v307 = vadd.f32 %v83, %v306
  %308 = vmatprep.mubr.f32.mxu0 0.0
  %309 = vmatmul.mubr.f32.gmra.mrb[0].mxu0 %v99
  %v310 = vpop.f32.mrb[0].mxu0
  %v311 = vadd.f32 %v79, %v310
  %v312 = vpop.f32.mrb[0].mxu0
  %v313 = vadd.f32 %v83, %v312
  %314 = vmatprep.mubr.f32.mxu0 0.0
  %315 = vmatmul.mubr.f32.gmra.mrb[0].mxu0 %v102
  %v316 = vpop.f32.mrb[0].mxu0
  %v317 = vadd.f32 %v79, %v316
  %v318 = vpop.f32.mrb[0].mxu0
  %v319 = vadd.f32 %v83, %v318
  %320 = vmatprep.mubr.f32.mxu0 0.0
  %321 = vmatmul.mubr.f32.gmra.mrb[0].mxu0 %v105
  %v322 = vpop.f32.mrb[0].mxu0
  %v323 = vadd.f32 %v79, %v322
  %v324 = vpop.f32.mrb[0].mxu0
  %v325 = vadd.f32 %v83, %v324
  %326 = vmatprep.mubr.f32.mxu0 0.0
  %327 = vmatmul.mubr.f32.gmra.mrb[0].mxu0 %v108
  %v328 = vpop.f32.mrb[0].mxu0
  %v329 = vadd.f32 %v79, %v328
  %v330 = vpop.f32.mrb[0].mxu0
  %v331 = vadd.f32 %v83, %v330
  %332 = vmatprep.mubr.f32.mxu0 0.0
  %333 = vmatmul.mubr.f32.gmra.mrb[0].mxu0 %v111
  %v334 = vpop.f32.mrb[0].mxu0
  %v335 = vadd.f32 %v79, %v334
  %v336 = vpop.f32.mrb[0].mxu0
  %v337 = vadd.f32 %v83, %v336
  %338 = vdwg.mxu0
  %339 = vst [vmem:[#allocation2] sm:$0xff] %v180
  %340 = vst [vmem:[#allocation2 + $0x8] sm:$0xff] %v182
  %341 = vst [vmem:[#allocation2 + $0x10] sm:$0xff] %v293
  %342 = vst [vmem:[#allocation2 + $0x18] sm:$0xff] %v295
  %343 = vst [vmem:[#allocation2 + $0x20] sm:$0xff] %v186
  %344 = vst [vmem:[#allocation2 + $0x28] sm:$0xff] %v188
  %345 = vst [vmem:[#allocation2 + $0x30] sm:$0xff] %v299
  %346 = vst [vmem:[#allocation2 + $0x38] sm:$0xff] %v301
  %347 = vst [vmem:[#allocation2 + $0x40] sm:$0xff] %v192
  %348 = vst [vmem:[#allocation2 + $0x48] sm:$0xff] %v194
  %349 = vst [vmem:[#allocation2 + $0x50] sm:$0xff] %v305
  %350 = vst [vmem:[#allocation2 + $0x58] sm:$0xff] %v307
  %351 = vst [vmem:[#allocation2 + $0x60] sm:$0xff] %v198
  %352 = vst [vmem:[#allocation2 + $0x68] sm:$0xff] %v200
  %353 = vst [vmem:[#allocation2 + $0x70] sm:$0xff] %v311
  %354 = vst [vmem:[#allocation2 + $0x78] sm:$0xff] %v313
  %355 = vst [vmem:[#allocation2 + $0x80] sm:$0xff] %v204
  %356 = vst [vmem:[#allocation2 + $0x88] sm:$0xff] %v206
  %357 = vst [vmem:[#allocation2 + $0x90] sm:$0xff] %v317
  %358 = vst [vmem:[#allocation2 + $0x98] sm:$0xff] %v319
  %359 = vst [vmem:[#allocation2 + $0xa0] sm:$0xff] %v210
  %360 = vst [vmem:[#allocation2 + $0xa8] sm:$0xff] %v212
  %361 = vst [vmem:[#allocation2 + $0xb0] sm:$0xff] %v323
  %362 = vst [vmem:[#allocation2 + $0xb8] sm:$0xff] %v325
  %363 = vst [vmem:[#allocation2 + $0xc0] sm:$0xff] %v216
  %364 = vst [vmem:[#allocation2 + $0xc8] sm:$0xff] %v218
  %365 = vst [vmem:[#allocation2 + $0xd0] sm:$0xff] %v329
  %366 = vst [vmem:[#allocation2 + $0xd8] sm:$0xff] %v331
  %367 = vst [vmem:[#allocation2 + $0xe0] sm:$0xff] %v222
  %368 = vst [vmem:[#allocation2 + $0xe8] sm:$0xff] %v224
  %369 = vst [vmem:[#allocation2 + $0xf0] sm:$0xff] %v335
  %370 = vst [vmem:[#allocation2 + $0xf8] sm:$0xff] %v337
  %v371 = vld [vmem:[%s2] sm:$0xff]
  %v372 = vld [vmem:[%s2 + $0x8] sm:$0xff]
  %v373 = vld [vmem:[%s2 + $0x10] sm:$0xff]
  %v374 = vld [vmem:[%s2 + $0x18] sm:$0xff]
  %v375 = vld [vmem:[%s2 + $0x20] sm:$0xff]
  %v376 = vld [vmem:[%s2 + $0x28] sm:$0xff]
  %v377 = vld [vmem:[%s2 + $0x30] sm:$0xff]
  %v378 = vld [vmem:[%s2 + $0x38] sm:$0xff]
  %v379 = vld [vmem:[%s2 + $0x40] sm:$0xff]
  %v380 = vld [vmem:[%s2 + $0x48] sm:$0xff]
  %v381 = vld [vmem:[%s2 + $0x50] sm:$0xff]
  %v382 = vld [vmem:[%s2 + $0x58] sm:$0xff]
  %v383 = vld [vmem:[%s2 + $0x60] sm:$0xff]
  %v384 = vld [vmem:[%s2 + $0x68] sm:$0xff]
  %v385 = vld [vmem:[%s2 + $0x70] sm:$0xff]
  %v386 = vld [vmem:[%s2 + $0x78] sm:$0xff]
  %v387 = vld [vmem:[%s2 + $0x80] sm:$0xff]
  %v388 = vld [vmem:[%s2 + $0x88] sm:$0xff]
  %v389 = vld [vmem:[%s2 + $0x90] sm:$0xff]
  %v390 = vld [vmem:[%s2 + $0x98] sm:$0xff]
  %v391 = vld [vmem:[%s2 + $0xa0] sm:$0xff]
  %v392 = vld [vmem:[%s2 + $0xa8] sm:$0xff]
  %v393 = vld [vmem:[%s2 + $0xb0] sm:$0xff]
  %v394 = vld [vmem:[%s2 + $0xb8] sm:$0xff]
  %v395 = vld [vmem:[%s2 + $0xc0] sm:$0xff]
  %v396 = vld [vmem:[%s2 + $0xc8] sm:$0xff]
  %v397 = vld [vmem:[%s2 + $0xd0] sm:$0xff]
  %v398 = vld [vmem:[%s2 + $0xd8] sm:$0xff]
  %v399 = vld [vmem:[%s2 + $0xe0] sm:$0xff]
  %v400 = vld [vmem:[%s2 + $0xe8] sm:$0xff]
  %v401 = vld [vmem:[%s2 + $0xf0] sm:$0xff]
  %v402 = vld [vmem:[%s2 + $0xf8] sm:$0xff]
  %v403 = vld [vmem:[%s2 + $0x100] sm:$0xff]
  %v404 = vld [vmem:[%s2 + $0x108] sm:$0xff]
  %v405 = vld [vmem:[%s2 + $0x110] sm:$0xff]
  %v406 = vld [vmem:[%s2 + $0x118] sm:$0xff]
  %v407 = vld [vmem:[%s2 + $0x120] sm:$0xff]
  %v408 = vld [vmem:[%s2 + $0x128] sm:$0xff]
  %v409 = vld [vmem:[%s2 + $0x130] sm:$0xff]
  %v410 = vld [vmem:[%s2 + $0x138] sm:$0xff]
  %v411 = vld [vmem:[%s2 + $0x140] sm:$0xff]
  %v412 = vld [vmem:[%s2 + $0x148] sm:$0xff]
  %v413 = vld [vmem:[%s2 + $0x150] sm:$0xff]
  %v414 = vld [vmem:[%s2 + $0x158] sm:$0xff]
  %v415 = vld [vmem:[%s2 + $0x160] sm:$0xff]
  %v416 = vld [vmem:[%s2 + $0x168] sm:$0xff]
  %v417 = vld [vmem:[%s2 + $0x170] sm:$0xff]
  %v418 = vld [vmem:[%s2 + $0x178] sm:$0xff]
  %v419 = vld [vmem:[%s2 + $0x180] sm:$0xff]
  %v420 = vld [vmem:[%s2 + $0x188] sm:$0xff]
  %v421 = vld [vmem:[%s2 + $0x190] sm:$0xff]
  %v422 = vld [vmem:[%s2 + $0x198] sm:$0xff]
  %v423 = vld [vmem:[%s2 + $0x1a0] sm:$0xff]
  %v424 = vld [vmem:[%s2 + $0x1a8] sm:$0xff]
  %v425 = vld [vmem:[%s2 + $0x1b0] sm:$0xff]
  %v426 = vld [vmem:[%s2 + $0x1b8] sm:$0xff]
  %v427 = vld [vmem:[%s2 + $0x1c0] sm:$0xff]
  %v428 = vld [vmem:[%s2 + $0x1c8] sm:$0xff]
  %v429 = vld [vmem:[%s2 + $0x1d0] sm:$0xff]
  %v430 = vld [vmem:[%s2 + $0x1d8] sm:$0xff]
  %v431 = vld [vmem:[%s2 + $0x1e0] sm:$0xff]
  %v432 = vld [vmem:[%s2 + $0x1e8] sm:$0xff]
  %v433 = vld [vmem:[%s2 + $0x1f0] sm:$0xff]
  %v434 = vld [vmem:[%s2 + $0x1f8] sm:$0xff]
  %s435 = smul.u32 0, 4
  %s436 = smul.addr %s435, 8
  %s437 = scalar_lea.vmem [#allocation2], %s436
  %v438 = vld [vmem:[%s437] sm:$0xff]
  %v439 = vld [vmem:[%s437 + $0x8] sm:$0xff]
  %v440 = vld [vmem:[%s437 + $0x10] sm:$0xff]
  %v441 = vld [vmem:[%s437 + $0x18] sm:$0xff]
  %442 = vmatprep.subr.mxu0 %v372
  %443 = vmatpush1.msra.mxu0 %v371
  %444 = vmatprep.subr.mxu0 %v376
  %445 = vmatpush1.msra.mxu0 %v375
  %446 = vmatprep.subr.mxu0 %v380
  %447 = vmatpush1.msra.mxu0 %v379
  %448 = vmatprep.subr.mxu0 %v384
  %449 = vmatpush1.msra.mxu0 %v383
  %450 = vmatprep.subr.mxu0 %v388
  %451 = vmatpush1.msra.mxu0 %v387
  %452 = vmatprep.subr.mxu0 %v392
  %453 = vmatpush1.msra.mxu0 %v391
  %454 = vmatprep.subr.mxu0 %v396
  %455 = vmatpush1.msra.mxu0 %v395
  %456 = vmatprep.subr.mxu0 %v400
  %457 = vmatpush1.msra.mxu0 %v399
  %458 = vmatprep.subr.mxu0 %v404
  %459 = vmatpush1.msra.mxu0 %v403
  %460 = vmatprep.subr.mxu0 %v408
  %461 = vmatpush1.msra.mxu0 %v407
  %462 = vmatprep.subr.mxu0 %v412
  %463 = vmatpush1.msra.mxu0 %v411
  %464 = vmatprep.subr.mxu0 %v416
  %465 = vmatpush1.msra.mxu0 %v415
  %466 = vmatprep.subr.mxu0 %v420
  %467 = vmatpush1.msra.mxu0 %v419
  %468 = vmatprep.subr.mxu0 %v424
  %469 = vmatpush1.msra.mxu0 %v423
  %470 = vmatprep.subr.mxu0 %v428
  %471 = vmatpush1.msra.mxu0 %v427
  %472 = vmatprep.subr.mxu0 %v432
  %473 = vmatpush1.msra.mxu0 %v431
  %474 = vmatprep.subr.mxu0 0.0
  %475 = vmatpush1.msra.mxu0 0.0
  %476 = vmatprep.subr.mxu0 0.0
  %477 = vmatpush1.msra.mxu0 0.0
  %478 = vmatprep.subr.mxu0 0.0
  %479 = vmatpush1.msra.mxu0 0.0
  %480 = vmatprep.subr.mxu0 0.0
  %481 = vmatpush1.msra.mxu0 0.0
  %482 = vmatprep.subr.mxu0 0.0
  %483 = vmatpush1.msra.mxu0 0.0
  %484 = vmatprep.subr.mxu0 0.0
  %485 = vmatpush1.msra.mxu0 0.0
  %486 = vmatprep.subr.mxu0 0.0
  %487 = vmatpush1.msra.mxu0 0.0
  %488 = vmatprep.subr.mxu0 0.0
  %489 = vmatpush1.msra.mxu0 0.0
  %490 = vmatprep.subr.mxu0 0.0
  %491 = vmatpush1.msra.mxu0 0.0
  %492 = vmatprep.subr.mxu0 0.0
  %493 = vmatpush1.msra.mxu0 0.0
  %494 = vmatprep.subr.mxu0 0.0
  %495 = vmatpush1.msra.mxu0 0.0
  %496 = vmatprep.subr.mxu0 0.0
  %497 = vmatpush1.msra.mxu0 0.0
  %498 = vmatprep.subr.mxu0 0.0
  %499 = vmatpush1.msra.mxu0 0.0
  %500 = vmatprep.subr.mxu0 0.0
  %501 = vmatpush1.msra.mxu0 0.0
  %502 = vmatprep.subr.mxu0 0.0
  %503 = vmatpush1.msra.mxu0 0.0
  %504 = vmatprep.subr.mxu0 0.0
  %505 = vmatpush1.msra.mxu0 0.0
  %506 = vmatprep.mubr.f32.mxu0 0.0
  %507 = vmatmul.mubr.f32.gmra.mrb[0].mxu0 0.0
  %v508 = vpop.f32.mrb[0].mxu0
  %v509 = vadd.f32 0.0, %v508
  %v510 = vpop.f32.mrb[0].mxu0
  %v511 = vadd.f32 0.0, %v510
  %512 = vdwg.mxu0
  %513 = vmatprep.subr.mxu0 %v374
  %514 = vmatpush1.msra.mxu0 %v373
  %515 = vmatprep.subr.mxu0 %v378
  %516 = vmatpush1.msra.mxu0 %v377
  %517 = vmatprep.subr.mxu0 %v382
  %518 = vmatpush1.msra.mxu0 %v381
  %519 = vmatprep.subr.mxu0 %v386
  %520 = vmatpush1.msra.mxu0 %v385
  %521 = vmatprep.subr.mxu0 %v390
  %522 = vmatpush1.msra.mxu0 %v389
  %523 = vmatprep.subr.mxu0 %v394
  %524 = vmatpush1.msra.mxu0 %v393
  %525 = vmatprep.subr.mxu0 %v398
  %526 = vmatpush1.msra.mxu0 %v397
  %527 = vmatprep.subr.mxu0 %v402
  %528 = vmatpush1.msra.mxu0 %v401
  %529 = vmatprep.subr.mxu0 %v406
  %530 = vmatpush1.msra.mxu0 %v405
  %531 = vmatprep.subr.mxu0 %v410
  %532 = vmatpush1.msra.mxu0 %v409
  %533 = vmatprep.subr.mxu0 %v414
  %534 = vmatpush1.msra.mxu0 %v413
  %535 = vmatprep.subr.mxu0 %v418
  %536 = vmatpush1.msra.mxu0 %v417
  %537 = vmatprep.subr.mxu0 %v422
  %538 = vmatpush1.msra.mxu0 %v421
  %539 = vmatprep.subr.mxu0 %v426
  %540 = vmatpush1.msra.mxu0 %v425
  %541 = vmatprep.subr.mxu0 %v430
  %542 = vmatpush1.msra.mxu0 %v429
  %543 = vmatprep.subr.mxu0 %v434
  %544 = vmatpush1.msra.mxu0 %v433
  %545 = vmatprep.subr.mxu0 0.0
  %546 = vmatpush1.msra.mxu0 0.0
  %547 = vmatprep.subr.mxu0 0.0
  %548 = vmatpush1.msra.mxu0 0.0
  %549 = vmatprep.subr.mxu0 0.0
  %550 = vmatpush1.msra.mxu0 0.0
  %551 = vmatprep.subr.mxu0 0.0
  %552 = vmatpush1.msra.mxu0 0.0
  %553 = vmatprep.subr.mxu0 0.0
  %554 = vmatpush1.msra.mxu0 0.0
  %555 = vmatprep.subr.mxu0 0.0
  %556 = vmatpush1.msra.mxu0 0.0
  %557 = vmatprep.subr.mxu0 0.0
  %558 = vmatpush1.msra.mxu0 0.0
  %559 = vmatprep.subr.mxu0 0.0
  %560 = vmatpush1.msra.mxu0 0.0
  %561 = vmatprep.subr.mxu0 0.0
  %562 = vmatpush1.msra.mxu0 0.0
  %563 = vmatprep.subr.mxu0 0.0
  %564 = vmatpush1.msra.mxu0 0.0
  %565 = vmatprep.subr.mxu0 0.0
  %566 = vmatpush1.msra.mxu0 0.0
  %567 = vmatprep.subr.mxu0 0.0
  %568 = vmatpush1.msra.mxu0 0.0
  %569 = vmatprep.subr.mxu0 0.0
  %570 = vmatpush1.msra.mxu0 0.0
  %571 = vmatprep.subr.mxu0 0.0
  %572 = vmatpush1.msra.mxu0 0.0
  %573 = vmatprep.subr.mxu0 0.0
  %574 = vmatpush1.msra.mxu0 0.0
  %575 = vmatprep.subr.mxu0 0.0
  %576 = vmatpush1.msra.mxu0 0.0
  %577 = vmatprep.mubr.f32.mxu0 0.0
  %578 = vmatmul.mubr.f32.gmra.mrb[0].mxu0 0.0
  %v579 = vpop.f32.mrb[0].mxu0
  %v580 = vadd.f32 0.0, %v579
  %v581 = vpop.f32.mrb[0].mxu0
  %v582 = vadd.f32 0.0, %v581
  %583 = vdwg.mxu0
  %v584 = vadd.f32 %v438, %v509
  %v585 = vadd.f32 %v439, %v511
  %v586 = vadd.f32 %v440, %v580
  %v587 = vadd.f32 %v441, %v582
  %v588 = vxor.u32 %v584, 2147483648
  %v589 = vmul.f32 %v588, 1.442695
  %v590 = vpow.pop %v589
  %v591 = vadd.f32 %v590, 1.0
  %v592 = vrcp.pop %v591
  %v593 = vmul.f32 1.0, %v592
  %v594 = vxor.u32 %v585, 2147483648
  %v595 = vmul.f32 %v594, 1.442695
  %v596 = vpow.pop %v595
  %v597 = vadd.f32 %v596, 1.0
  %v598 = vrcp.pop %v597
  %v599 = vmul.f32 1.0, %v598
  %v600 = vtanh.pop %v586
  %v601 = vxor.u32 %v587, 2147483648
  %v602 = vmul.f32 %v601, 1.442695
  %v603 = vpow.pop %v602
  %v604 = vadd.f32 %v603, 1.0
  %v605 = vrcp.pop %v604
  %v606 = vmul.f32 1.0, %v605
  %v607 = vmul.f32 %v599, 0.0
  %v608 = vmul.f32 %v593, %v600
  %v609 = vadd.f32 %v607, %v608
  %v610 = vtanh.pop %v609
  %v611 = vmul.f32 %v606, %v610
  %s612 = smul.u32 1, 4
  %s613 = smul.addr %s612, 8
  %s614 = scalar_lea.vmem [#allocation2], %s613
  %v615 = vld [vmem:[%s614] sm:$0xff]
  %v616 = vld [vmem:[%s614 + $0x8] sm:$0xff]
  %v617 = vld [vmem:[%s614 + $0x10] sm:$0xff]
  %v618 = vld [vmem:[%s614 + $0x18] sm:$0xff]
  %619 = vmatprep.subr.mxu0 %v372
  %620 = vmatpush1.msra.mxu0 %v371
  %621 = vmatprep.subr.mxu0 %v376
  %622 = vmatpush1.msra.mxu0 %v375
  %623 = vmatprep.subr.mxu0 %v380
  %624 = vmatpush1.msra.mxu0 %v379
  %625 = vmatprep.subr.mxu0 %v384
  %626 = vmatpush1.msra.mxu0 %v383
  %627 = vmatprep.subr.mxu0 %v388
  %628 = vmatpush1.msra.mxu0 %v387
  %629 = vmatprep.subr.mxu0 %v392
  %630 = vmatpush1.msra.mxu0 %v391
  %631 = vmatprep.subr.mxu0 %v396
  %632 = vmatpush1.msra.mxu0 %v395
  %633 = vmatprep.subr.mxu0 %v400
  %634 = vmatpush1.msra.mxu0 %v399
  %635 = vmatprep.subr.mxu0 %v404
  %636 = vmatpush1.msra.mxu0 %v403
  %637 = vmatprep.subr.mxu0 %v408
  %638 = vmatpush1.msra.mxu0 %v407
  %639 = vmatprep.subr.mxu0 %v412
  %640 = vmatpush1.msra.mxu0 %v411
  %641 = vmatprep.subr.mxu0 %v416
  %642 = vmatpush1.msra.mxu0 %v415
  %643 = vmatprep.subr.mxu0 %v420
  %644 = vmatpush1.msra.mxu0 %v419
  %645 = vmatprep.subr.mxu0 %v424
  %646 = vmatpush1.msra.mxu0 %v423
  %647 = vmatprep.subr.mxu0 %v428
  %648 = vmatpush1.msra.mxu0 %v427
  %649 = vmatprep.subr.mxu0 %v432
  %650 = vmatpush1.msra.mxu0 %v431
  %651 = vmatprep.subr.mxu0 0.0
  %652 = vmatpush1.msra.mxu0 0.0
  %653 = vmatprep.subr.mxu0 0.0
  %654 = vmatpush1.msra.mxu0 0.0
  %655 = vmatprep.subr.mxu0 0.0
  %656 = vmatpush1.msra.mxu0 0.0
  %657 = vmatprep.subr.mxu0 0.0
  %658 = vmatpush1.msra.mxu0 0.0
  %659 = vmatprep.subr.mxu0 0.0
  %660 = vmatpush1.msra.mxu0 0.0
  %661 = vmatprep.subr.mxu0 0.0
  %662 = vmatpush1.msra.mxu0 0.0
  %663 = vmatprep.subr.mxu0 0.0
  %664 = vmatpush1.msra.mxu0 0.0
  %665 = vmatprep.subr.mxu0 0.0
  %666 = vmatpush1.msra.mxu0 0.0
  %667 = vmatprep.subr.mxu0 0.0
  %668 = vmatpush1.msra.mxu0 0.0
  %669 = vmatprep.subr.mxu0 0.0
  %670 = vmatpush1.msra.mxu0 0.0
  %671 = vmatprep.subr.mxu0 0.0
  %672 = vmatpush1.msra.mxu0 0.0
  %673 = vmatprep.subr.mxu0 0.0
  %674 = vmatpush1.msra.mxu0 0.0
  %675 = vmatprep.subr.mxu0 0.0
  %676 = vmatpush1.msra.mxu0 0.0
  %677 = vmatprep.subr.mxu0 0.0
  %678 = vmatpush1.msra.mxu0 0.0
  %679 = vmatprep.subr.mxu0 0.0
  %680 = vmatpush1.msra.mxu0 0.0
  %681 = vmatprep.subr.mxu0 0.0
  %682 = vmatpush1.msra.mxu0 0.0
  %683 = vmatprep.mubr.f32.mxu0 0.0
  %684 = vmatmul.mubr.f32.gmra.mrb[0].mxu0 %v611
  %v685 = vpop.f32.mrb[0].mxu0
  %v686 = vadd.f32 0.0, %v685
  %v687 = vpop.f32.mrb[0].mxu0
  %v688 = vadd.f32 0.0, %v687
  %689 = vdwg.mxu0
  %690 = vmatprep.subr.mxu0 %v374
  %691 = vmatpush1.msra.mxu0 %v373
  %692 = vmatprep.subr.mxu0 %v378
  %693 = vmatpush1.msra.mxu0 %v377
  %694 = vmatprep.subr.mxu0 %v382
  %695 = vmatpush1.msra.mxu0 %v381
  %696 = vmatprep.subr.mxu0 %v386
  %697 = vmatpush1.msra.mxu0 %v385
  %698 = vmatprep.subr.mxu0 %v390
  %699 = vmatpush1.msra.mxu0 %v389
  %700 = vmatprep.subr.mxu0 %v394
  %701 = vmatpush1.msra.mxu0 %v393
  %702 = vmatprep.subr.mxu0 %v398
  %703 = vmatpush1.msra.mxu0 %v397
  %704 = vmatprep.subr.mxu0 %v402
  %705 = vmatpush1.msra.mxu0 %v401
  %706 = vmatprep.subr.mxu0 %v406
  %707 = vmatpush1.msra.mxu0 %v405
  %708 = vmatprep.subr.mxu0 %v410
  %709 = vmatpush1.msra.mxu0 %v409
  %710 = vmatprep.subr.mxu0 %v414
  %711 = vmatpush1.msra.mxu0 %v413
  %712 = vmatprep.subr.mxu0 %v418
  %713 = vmatpush1.msra.mxu0 %v417
  %714 = vmatprep.subr.mxu0 %v422
  %715 = vmatpush1.msra.mxu0 %v421
  %716 = vmatprep.subr.mxu0 %v426
  %717 = vmatpush1.msra.mxu0 %v425
  %718 = vmatprep.subr.mxu0 %v430
  %719 = vmatpush1.msra.mxu0 %v429
  %720 = vmatprep.subr.mxu0 %v434
  %721 = vmatpush1.msra.mxu0 %v433
  %722 = vmatprep.subr.mxu0 0.0
  %723 = vmatpush1.msra.mxu0 0.0
  %724 = vmatprep.subr.mxu0 0.0
  %725 = vmatpush1.msra.mxu0 0.0
  %726 = vmatprep.subr.mxu0 0.0
  %727 = vmatpush1.msra.mxu0 0.0
  %728 = vmatprep.subr.mxu0 0.0
  %729 = vmatpush1.msra.mxu0 0.0
  %730 = vmatprep.subr.mxu0 0.0
  %731 = vmatpush1.msra.mxu0 0.0
  %732 = vmatprep.subr.mxu0 0.0
  %733 = vmatpush1.msra.mxu0 0.0
  %734 = vmatprep.subr.mxu0 0.0
  %735 = vmatpush1.msra.mxu0 0.0
  %736 = vmatprep.subr.mxu0 0.0
  %737 = vmatpush1.msra.mxu0 0.0
  %738 = vmatprep.subr.mxu0 0.0
  %739 = vmatpush1.msra.mxu0 0.0
  %740 = vmatprep.subr.mxu0 0.0
  %741 = vmatpush1.msra.mxu0 0.0
  %742 = vmatprep.subr.mxu0 0.0
  %743 = vmatpush1.msra.mxu0 0.0
  %744 = vmatprep.subr.mxu0 0.0
  %745 = vmatpush1.msra.mxu0 0.0
  %746 = vmatprep.subr.mxu0 0.0
  %747 = vmatpush1.msra.mxu0 0.0
  %748 = vmatprep.subr.mxu0 0.0
  %749 = vmatpush1.msra.mxu0 0.0
  %750 = vmatprep.subr.mxu0 0.0
  %751 = vmatpush1.msra.mxu0 0.0
  %752 = vmatprep.subr.mxu0 0.0
  %753 = vmatpush1.msra.mxu0 0.0
  %754 = vmatprep.mubr.f32.mxu0 0.0
  %755 = vmatmul.mubr.f32.gmra.mrb[0].mxu0 %v611
  %v756 = vpop.f32.mrb[0].mxu0
  %v757 = vadd.f32 0.0, %v756
  %v758 = vpop.f32.mrb[0].mxu0
  %v759 = vadd.f32 0.0, %v758
  %760 = vdwg.mxu0
  %v761 = vadd.f32 %v615, %v686
  %v762 = vadd.f32 %v616, %v688
  %v763 = vadd.f32 %v617, %v757
  %v764 = vadd.f32 %v618, %v759
  %v765 = vxor.u32 %v761, 2147483648
  %v766 = vmul.f32 %v765, 1.442695
  %v767 = vpow.pop %v766
  %v768 = vadd.f32 %v767, 1.0
  %v769 = vrcp.pop %v768
  %v770 = vmul.f32 1.0, %v769
  %v771 = vxor.u32 %v762, 2147483648
  %v772 = vmul.f32 %v771, 1.442695
  %v773 = vpow.pop %v772
  %v774 = vadd.f32 %v773, 1.0
  %v775 = vrcp.pop %v774
  %v776 = vmul.f32 1.0, %v775
  %v777 = vtanh.pop %v763
  %v778 = vxor.u32 %v764, 2147483648
  %v779 = vmul.f32 %v778, 1.442695
  %v780 = vpow.pop %v779
  %v781 = vadd.f32 %v780, 1.0
  %v782 = vrcp.pop %v781
  %v783 = vmul.f32 1.0, %v782
  %v784 = vmul.f32 %v776, %v609
  %v785 = vmul.f32 %v770, %v777
  %v786 = vadd.f32 %v784, %v785
  %v787 = vtanh.pop %v786
  %v788 = vmul.f32 %v783, %v787
  %s789 = smul.u32 2, 4
  %s790 = smul.addr %s789, 8
  %s791 = scalar_lea.vmem [#allocation2], %s790
  %v792 = vld [vmem:[%s791] sm:$0xff]
  %v793 = vld [vmem:[%s791 + $0x8] sm:$0xff]
  %v794 = vld [vmem:[%s791 + $0x10] sm:$0xff]
  %v795 = vld [vmem:[%s791 + $0x18] sm:$0xff]
  %796 = vmatprep.subr.mxu0 %v372
  %797 = vmatpush1.msra.mxu0 %v371
  %798 = vmatprep.subr.mxu0 %v376
  %799 = vmatpush1.msra.mxu0 %v375
  %800 = vmatprep.subr.mxu0 %v380
  %801 = vmatpush1.msra.mxu0 %v379
  %802 = vmatprep.subr.mxu0 %v384
  %803 = vmatpush1.msra.mxu0 %v383
  %804 = vmatprep.subr.mxu0 %v388
  %805 = vmatpush1.msra.mxu0 %v387
  %806 = vmatprep.subr.mxu0 %v392
  %807 = vmatpush1.msra.mxu0 %v391
  %808 = vmatprep.subr.mxu0 %v396
  %809 = vmatpush1.msra.mxu0 %v395
  %810 = vmatprep.subr.mxu0 %v400
  %811 = vmatpush1.msra.mxu0 %v399
  %812 = vmatprep.subr.mxu0 %v404
  %813 = vmatpush1.msra.mxu0 %v403
  %814 = vmatprep.subr.mxu0 %v408
  %815 = vmatpush1.msra.mxu0 %v407
  %816 = vmatprep.subr.mxu0 %v412
  %817 = vmatpush1.msra.mxu0 %v411
  %818 = vmatprep.subr.mxu0 %v416
  %819 = vmatpush1.msra.mxu0 %v415
  %820 = vmatprep.subr.mxu0 %v420
  %821 = vmatpush1.msra.mxu0 %v419
  %822 = vmatprep.subr.mxu0 %v424
  %823 = vmatpush1.msra.mxu0 %v423
  %824 = vmatprep.subr.mxu0 %v428
  %825 = vmatpush1.msra.mxu0 %v427
  %826 = vmatprep.subr.mxu0 %v432
  %827 = vmatpush1.msra.mxu0 %v431
  %828 = vmatprep.subr.mxu0 0.0
  %829 = vmatpush1.msra.mxu0 0.0
  %830 = vmatprep.subr.mxu0 0.0
  %831 = vmatpush1.msra.mxu0 0.0
  %832 = vmatprep.subr.mxu0 0.0
  %833 = vmatpush1.msra.mxu0 0.0
  %834 = vmatprep.subr.mxu0 0.0
  %835 = vmatpush1.msra.mxu0 0.0
  %836 = vmatprep.subr.mxu0 0.0
  %837 = vmatpush1.msra.mxu0 0.0
  %838 = vmatprep.subr.mxu0 0.0
  %839 = vmatpush1.msra.mxu0 0.0
  %840 = vmatprep.subr.mxu0 0.0
  %841 = vmatpush1.msra.mxu0 0.0
  %842 = vmatprep.subr.mxu0 0.0
  %843 = vmatpush1.msra.mxu0 0.0
  %844 = vmatprep.subr.mxu0 0.0
  %845 = vmatpush1.msra.mxu0 0.0
  %846 = vmatprep.subr.mxu0 0.0
  %847 = vmatpush1.msra.mxu0 0.0
  %848 = vmatprep.subr.mxu0 0.0
  %849 = vmatpush1.msra.mxu0 0.0
  %850 = vmatprep.subr.mxu0 0.0
  %851 = vmatpush1.msra.mxu0 0.0
  %852 = vmatprep.subr.mxu0 0.0
  %853 = vmatpush1.msra.mxu0 0.0
  %854 = vmatprep.subr.mxu0 0.0
  %855 = vmatpush1.msra.mxu0 0.0
  %856 = vmatprep.subr.mxu0 0.0
  %857 = vmatpush1.msra.mxu0 0.0
  %858 = vmatprep.subr.mxu0 0.0
  %859 = vmatpush1.msra.mxu0 0.0
  %860 = vmatprep.mubr.f32.mxu0 0.0
  %861 = vmatmul.mubr.f32.gmra.mrb[0].mxu0 %v788
  %v862 = vpop.f32.mrb[0].mxu0
  %v863 = vadd.f32 0.0, %v862
  %v864 = vpop.f32.mrb[0].mxu0
  %v865 = vadd.f32 0.0, %v864
  %866 = vdwg.mxu0
  %867 = vmatprep.subr.mxu0 %v374
  %868 = vmatpush1.msra.mxu0 %v373
  %869 = vmatprep.subr.mxu0 %v378
  %870 = vmatpush1.msra.mxu0 %v377
  %871 = vmatprep.subr.mxu0 %v382
  %872 = vmatpush1.msra.mxu0 %v381
  %873 = vmatprep.subr.mxu0 %v386
  %874 = vmatpush1.msra.mxu0 %v385
  %875 = vmatprep.subr.mxu0 %v390
  %876 = vmatpush1.msra.mxu0 %v389
  %877 = vmatprep.subr.mxu0 %v394
  %878 = vmatpush1.msra.mxu0 %v393
  %879 = vmatprep.subr.mxu0 %v398
  %880 = vmatpush1.msra.mxu0 %v397
  %881 = vmatprep.subr.mxu0 %v402
  %882 = vmatpush1.msra.mxu0 %v401
  %883 = vmatprep.subr.mxu0 %v406
  %884 = vmatpush1.msra.mxu0 %v405
  %885 = vmatprep.subr.mxu0 %v410
  %886 = vmatpush1.msra.mxu0 %v409
  %887 = vmatprep.subr.mxu0 %v414
  %888 = vmatpush1.msra.mxu0 %v413
  %889 = vmatprep.subr.mxu0 %v418
  %890 = vmatpush1.msra.mxu0 %v417
  %891 = vmatprep.subr.mxu0 %v422
  %892 = vmatpush1.msra.mxu0 %v421
  %893 = vmatprep.subr.mxu0 %v426
  %894 = vmatpush1.msra.mxu0 %v425
  %895 = vmatprep.subr.mxu0 %v430
  %896 = vmatpush1.msra.mxu0 %v429
  %897 = vmatprep.subr.mxu0 %v434
  %898 = vmatpush1.msra.mxu0 %v433
  %899 = vmatprep.subr.mxu0 0.0
  %900 = vmatpush1.msra.mxu0 0.0
  %901 = vmatprep.subr.mxu0 0.0
  %902 = vmatpush1.msra.mxu0 0.0
  %903 = vmatprep.subr.mxu0 0.0
  %904 = vmatpush1.msra.mxu0 0.0
  %905 = vmatprep.subr.mxu0 0.0
  %906 = vmatpush1.msra.mxu0 0.0
  %907 = vmatprep.subr.mxu0 0.0
  %908 = vmatpush1.msra.mxu0 0.0
  %909 = vmatprep.subr.mxu0 0.0
  %910 = vmatpush1.msra.mxu0 0.0
  %911 = vmatprep.subr.mxu0 0.0
  %912 = vmatpush1.msra.mxu0 0.0
  %913 = vmatprep.subr.mxu0 0.0
  %914 = vmatpush1.msra.mxu0 0.0
  %915 = vmatprep.subr.mxu0 0.0
  %916 = vmatpush1.msra.mxu0 0.0
  %917 = vmatprep.subr.mxu0 0.0
  %918 = vmatpush1.msra.mxu0 0.0
  %919 = vmatprep.subr.mxu0 0.0
  %920 = vmatpush1.msra.mxu0 0.0
  %921 = vmatprep.subr.mxu0 0.0
  %922 = vmatpush1.msra.mxu0 0.0
  %923 = vmatprep.subr.mxu0 0.0
  %924 = vmatpush1.msra.mxu0 0.0
  %925 = vmatprep.subr.mxu0 0.0
  %926 = vmatpush1.msra.mxu0 0.0
  %927 = vmatprep.subr.mxu0 0.0
  %928 = vmatpush1.msra.mxu0 0.0
  %929 = vmatprep.subr.mxu0 0.0
  %930 = vmatpush1.msra.mxu0 0.0
  %931 = vmatprep.mubr.f32.mxu0 0.0
  %932 = vmatmul.mubr.f32.gmra.mrb[0].mxu0 %v788
  %v933 = vpop.f32.mrb[0].mxu0
  %v934 = vadd.f32 0.0, %v933
  %v935 = vpop.f32.mrb[0].mxu0
  %v936 = vadd.f32 0.0, %v935
  %937 = vdwg.mxu0
  %v938 = vadd.f32 %v792, %v863
  %v939 = vadd.f32 %v793, %v865
  %v940 = vadd.f32 %v794, %v934
  %v941 = vadd.f32 %v795, %v936
  %v942 = vxor.u32 %v938, 2147483648
  %v943 = vmul.f32 %v942, 1.442695
  %v944 = vpow.pop %v943
  %v945 = vadd.f32 %v944, 1.0
  %v946 = vrcp.pop %v945
  %v947 = vmul.f32 1.0, %v946
  %v948 = vxor.u32 %v939, 2147483648
  %v949 = vmul.f32 %v948, 1.442695
  %v950 = vpow.pop %v949
  %v951 = vadd.f32 %v950, 1.0
  %v952 = vrcp.pop %v951
  %v953 = vmul.f32 1.0, %v952
  %v954 = vtanh.pop %v940
  %v955 = vxor.u32 %v941, 2147483648
  %v956 = vmul.f32 %v955, 1.442695
  %v957 = vpow.pop %v956
  %v958 = vadd.f32 %v957, 1.0
  %v959 = vrcp.pop %v958
  %v960 = vmul.f32 1.0, %v959
  %v961 = vmul.f32 %v953, %v786
  %v962 = vmul.f32 %v947, %v954
  %v963 = vadd.f32 %v961, %v962
  %v964 = vtanh.pop %v963
  %v965 = vmul.f32 %v960, %v964
  %s966 = smul.u32 3, 4
  %s967 = smul.addr %s966, 8
  %s968 = scalar_lea.vmem [#allocation2], %s967
  %v969 = vld [vmem:[%s968] sm:$0xff]
  %v970 = vld [vmem:[%s968 + $0x8] sm:$0xff]
  %v971 = vld [vmem:[%s968 + $0x10] sm:$0xff]
  %v972 = vld [vmem:[%s968 + $0x18] sm:$0xff]
  %973 = vmatprep.subr.mxu0 %v372
  %974 = vmatpush1.msra.mxu0 %v371
  %975 = vmatprep.subr.mxu0 %v376
  %976 = vmatpush1.msra.mxu0 %v375
  %977 = vmatprep.subr.mxu0 %v380
  %978 = vmatpush1.msra.mxu0 %v379
  %979 = vmatprep.subr.mxu0 %v384
  %980 = vmatpush1.msra.mxu0 %v383
  %981 = vmatprep.subr.mxu0 %v388
  %982 = vmatpush1.msra.mxu0 %v387
  %983 = vmatprep.subr.mxu0 %v392
  %984 = vmatpush1.msra.mxu0 %v391
  %985 = vmatprep.subr.mxu0 %v396
  %986 = vmatpush1.msra.mxu0 %v395
  %987 = vmatprep.subr.mxu0 %v400
  %988 = vmatpush1.msra.mxu0 %v399
  %989 = vmatprep.subr.mxu0 %v404
  %990 = vmatpush1.msra.mxu0 %v403
  %991 = vmatprep.subr.mxu0 %v408
  %992 = vmatpush1.msra.mxu0 %v407
  %993 = vmatprep.subr.mxu0 %v412
  %994 = vmatpush1.msra.mxu0 %v411
  %995 = vmatprep.subr.mxu0 %v416
  %996 = vmatpush1.msra.mxu0 %v415
  %997 = vmatprep.subr.mxu0 %v420
  %998 = vmatpush1.msra.mxu0 %v419
  %999 = vmatprep.subr.mxu0 %v424
  %1000 = vmatpush1.msra.mxu0 %v423
  %1001 = vmatprep.subr.mxu0 %v428
  %1002 = vmatpush1.msra.mxu0 %v427
  %1003 = vmatprep.subr.mxu0 %v432
  %1004 = vmatpush1.msra.mxu0 %v431
  %1005 = vmatprep.subr.mxu0 0.0
  %1006 = vmatpush1.msra.mxu0 0.0
  %1007 = vmatprep.subr.mxu0 0.0
  %1008 = vmatpush1.msra.mxu0 0.0
  %1009 = vmatprep.subr.mxu0 0.0
  %1010 = vmatpush1.msra.mxu0 0.0
  %1011 = vmatprep.subr.mxu0 0.0
  %1012 = vmatpush1.msra.mxu0 0.0
  %1013 = vmatprep.subr.mxu0 0.0
  %1014 = vmatpush1.msra.mxu0 0.0
  %1015 = vmatprep.subr.mxu0 0.0
  %1016 = vmatpush1.msra.mxu0 0.0
  %1017 = vmatprep.subr.mxu0 0.0
  %1018 = vmatpush1.msra.mxu0 0.0
  %1019 = vmatprep.subr.mxu0 0.0
  %1020 = vmatpush1.msra.mxu0 0.0
  %1021 = vmatprep.subr.mxu0 0.0
  %1022 = vmatpush1.msra.mxu0 0.0
  %1023 = vmatprep.subr.mxu0 0.0
  %1024 = vmatpush1.msra.mxu0 0.0
  %1025 = vmatprep.subr.mxu0 0.0
  %1026 = vmatpush1.msra.mxu0 0.0
  %1027 = vmatprep.subr.mxu0 0.0
  %1028 = vmatpush1.msra.mxu0 0.0
  %1029 = vmatprep.subr.mxu0 0.0
  %1030 = vmatpush1.msra.mxu0 0.0
  %1031 = vmatprep.subr.mxu0 0.0
  %1032 = vmatpush1.msra.mxu0 0.0
  %1033 = vmatprep.subr.mxu0 0.0
  %1034 = vmatpush1.msra.mxu0 0.0
  %1035 = vmatprep.subr.mxu0 0.0
  %1036 = vmatpush1.msra.mxu0 0.0
  %1037 = vmatprep.mubr.f32.mxu0 0.0
  %1038 = vmatmul.mubr.f32.gmra.mrb[0].mxu0 %v965
  %v1039 = vpop.f32.mrb[0].mxu0
  %v1040 = vadd.f32 0.0, %v1039
  %v1041 = vpop.f32.mrb[0].mxu0
  %v1042 = vadd.f32 0.0, %v1041
  %1043 = vdwg.mxu0
  %1044 = vmatprep.subr.mxu0 %v374
  %1045 = vmatpush1.msra.mxu0 %v373
  %1046 = vmatprep.subr.mxu0 %v378
  %1047 = vmatpush1.msra.mxu0 %v377
  %1048 = vmatprep.subr.mxu0 %v382
  %1049 = vmatpush1.msra.mxu0 %v381
  %1050 = vmatprep.subr.mxu0 %v386
  %1051 = vmatpush1.msra.mxu0 %v385
  %1052 = vmatprep.subr.mxu0 %v390
  %1053 = vmatpush1.msra.mxu0 %v389
  %1054 = vmatprep.subr.mxu0 %v394
  %1055 = vmatpush1.msra.mxu0 %v393
  %1056 = vmatprep.subr.mxu0 %v398
  %1057 = vmatpush1.msra.mxu0 %v397
  %1058 = vmatprep.subr.mxu0 %v402
  %1059 = vmatpush1.msra.mxu0 %v401
  %1060 = vmatprep.subr.mxu0 %v406
  %1061 = vmatpush1.msra.mxu0 %v405
  %1062 = vmatprep.subr.mxu0 %v410
  %1063 = vmatpush1.msra.mxu0 %v409
  %1064 = vmatprep.subr.mxu0 %v414
  %1065 = vmatpush1.msra.mxu0 %v413
  %1066 = vmatprep.subr.mxu0 %v418
  %1067 = vmatpush1.msra.mxu0 %v417
  %1068 = vmatprep.subr.mxu0 %v422
  %1069 = vmatpush1.msra.mxu0 %v421
  %1070 = vmatprep.subr.mxu0 %v426
  %1071 = vmatpush1.msra.mxu0 %v425
  %1072 = vmatprep.subr.mxu0 %v430
  %1073 = vmatpush1.msra.mxu0 %v429
  %1074 = vmatprep.subr.mxu0 %v434
  %1075 = vmatpush1.msra.mxu0 %v433
  %1076 = vmatprep.subr.mxu0 0.0
  %1077 = vmatpush1.msra.mxu0 0.0
  %1078 = vmatprep.subr.mxu0 0.0
  %1079 = vmatpush1.msra.mxu0 0.0
  %1080 = vmatprep.subr.mxu0 0.0
  %1081 = vmatpush1.msra.mxu0 0.0
  %1082 = vmatprep.subr.mxu0 0.0
  %1083 = vmatpush1.msra.mxu0 0.0
  %1084 = vmatprep.subr.mxu0 0.0
  %1085 = vmatpush1.msra.mxu0 0.0
  %1086 = vmatprep.subr.mxu0 0.0
  %1087 = vmatpush1.msra.mxu0 0.0
  %1088 = vmatprep.subr.mxu0 0.0
  %1089 = vmatpush1.msra.mxu0 0.0
  %1090 = vmatprep.subr.mxu0 0.0
  %1091 = vmatpush1.msra.mxu0 0.0
  %1092 = vmatprep.subr.mxu0 0.0
  %1093 = vmatpush1.msra.mxu0 0.0
  %1094 = vmatprep.subr.mxu0 0.0
  %1095 = vmatpush1.msra.mxu0 0.0
  %1096 = vmatprep.subr.mxu0 0.0
  %1097 = vmatpush1.msra.mxu0 0.0
  %1098 = vmatprep.subr.mxu0 0.0
  %1099 = vmatpush1.msra.mxu0 0.0
  %1100 = vmatprep.subr.mxu0 0.0
  %1101 = vmatpush1.msra.mxu0 0.0
  %1102 = vmatprep.subr.mxu0 0.0
  %1103 = vmatpush1.msra.mxu0 0.0
  %1104 = vmatprep.subr.mxu0 0.0
  %1105 = vmatpush1.msra.mxu0 0.0
  %1106 = vmatprep.subr.mxu0 0.0
  %1107 = vmatpush1.msra.mxu0 0.0
  %1108 = vmatprep.mubr.f32.mxu0 0.0
  %1109 = vmatmul.mubr.f32.gmra.mrb[0].mxu0 %v965
  %v1110 = vpop.f32.mrb[0].mxu0
  %v1111 = vadd.f32 0.0, %v1110
  %v1112 = vpop.f32.mrb[0].mxu0
  %v1113 = vadd.f32 0.0, %v1112
  %1114 = vdwg.mxu0
  %v1115 = vadd.f32 %v969, %v1040
  %v1116 = vadd.f32 %v970, %v1042
  %v1117 = vadd.f32 %v971, %v1111
  %v1118 = vadd.f32 %v972, %v1113
  %v1119 = vxor.u32 %v1115, 2147483648
  %v1120 = vmul.f32 %v1119, 1.442695
  %v1121 = vpow.pop %v1120
  %v1122 = vadd.f32 %v1121, 1.0
  %v1123 = vrcp.pop %v1122
  %v1124 = vmul.f32 1.0, %v1123
  %v1125 = vxor.u32 %v1116, 2147483648
  %v1126 = vmul.f32 %v1125, 1.442695
  %v1127 = vpow.pop %v1126
  %v1128 = vadd.f32 %v1127, 1.0
  %v1129 = vrcp.pop %v1128
  %v1130 = vmul.f32 1.0, %v1129
  %v1131 = vtanh.pop %v1117
  %v1132 = vxor.u32 %v1118, 2147483648
  %v1133 = vmul.f32 %v1132, 1.442695
  %v1134 = vpow.pop %v1133
  %v1135 = vadd.f32 %v1134, 1.0
  %v1136 = vrcp.pop %v1135
  %v1137 = vmul.f32 1.0, %v1136
  %v1138 = vmul.f32 %v1130, %v963
  %v1139 = vmul.f32 %v1124, %v1131
  %v1140 = vadd.f32 %v1138, %v1139
  %v1141 = vtanh.pop %v1140
  %v1142 = vmul.f32 %v1137, %v1141
  %s1143 = smul.u32 4, 4
  %s1144 = smul.addr %s1143, 8
  %s1145 = scalar_lea.vmem [#allocation2], %s1144
  %v1146 = vld [vmem:[%s1145] sm:$0xff]
  %v1147 = vld [vmem:[%s1145 + $0x8] sm:$0xff]
  %v1148 = vld [vmem:[%s1145 + $0x10] sm:$0xff]
  %v1149 = vld [vmem:[%s1145 + $0x18] sm:$0xff]
  %1150 = vmatprep.subr.mxu0 %v372
  %1151 = vmatpush1.msra.mxu0 %v371
  %1152 = vmatprep.subr.mxu0 %v376
  %1153 = vmatpush1.msra.mxu0 %v375
  %1154 = vmatprep.subr.mxu0 %v380
  %1155 = vmatpush1.msra.mxu0 %v379
  %1156 = vmatprep.subr.mxu0 %v384
  %1157 = vmatpush1.msra.mxu0 %v383
  %1158 = vmatprep.subr.mxu0 %v388
  %1159 = vmatpush1.msra.mxu0 %v387
  %1160 = vmatprep.subr.mxu0 %v392
  %1161 = vmatpush1.msra.mxu0 %v391
  %1162 = vmatprep.subr.mxu0 %v396
  %1163 = vmatpush1.msra.mxu0 %v395
  %1164 = vmatprep.subr.mxu0 %v400
  %1165 = vmatpush1.msra.mxu0 %v399
  %1166 = vmatprep.subr.mxu0 %v404
  %1167 = vmatpush1.msra.mxu0 %v403
  %1168 = vmatprep.subr.mxu0 %v408
  %1169 = vmatpush1.msra.mxu0 %v407
  %1170 = vmatprep.subr.mxu0 %v412
  %1171 = vmatpush1.msra.mxu0 %v411
  %1172 = vmatprep.subr.mxu0 %v416
  %1173 = vmatpush1.msra.mxu0 %v415
  %1174 = vmatprep.subr.mxu0 %v420
  %1175 = vmatpush1.msra.mxu0 %v419
  %1176 = vmatprep.subr.mxu0 %v424
  %1177 = vmatpush1.msra.mxu0 %v423
  %1178 = vmatprep.subr.mxu0 %v428
  %1179 = vmatpush1.msra.mxu0 %v427
  %1180 = vmatprep.subr.mxu0 %v432
  %1181 = vmatpush1.msra.mxu0 %v431
  %1182 = vmatprep.subr.mxu0 0.0
  %1183 = vmatpush1.msra.mxu0 0.0
  %1184 = vmatprep.subr.mxu0 0.0
  %1185 = vmatpush1.msra.mxu0 0.0
  %1186 = vmatprep.subr.mxu0 0.0
  %1187 = vmatpush1.msra.mxu0 0.0
  %1188 = vmatprep.subr.mxu0 0.0
  %1189 = vmatpush1.msra.mxu0 0.0
  %1190 = vmatprep.subr.mxu0 0.0
  %1191 = vmatpush1.msra.mxu0 0.0
  %1192 = vmatprep.subr.mxu0 0.0
  %1193 = vmatpush1.msra.mxu0 0.0
  %1194 = vmatprep.subr.mxu0 0.0
  %1195 = vmatpush1.msra.mxu0 0.0
  %1196 = vmatprep.subr.mxu0 0.0
  %1197 = vmatpush1.msra.mxu0 0.0
  %1198 = vmatprep.subr.mxu0 0.0
  %1199 = vmatpush1.msra.mxu0 0.0
  %1200 = vmatprep.subr.mxu0 0.0
  %1201 = vmatpush1.msra.mxu0 0.0
  %1202 = vmatprep.subr.mxu0 0.0
  %1203 = vmatpush1.msra.mxu0 0.0
  %1204 = vmatprep.subr.mxu0 0.0
  %1205 = vmatpush1.msra.mxu0 0.0
  %1206 = vmatprep.subr.mxu0 0.0
  %1207 = vmatpush1.msra.mxu0 0.0
  %1208 = vmatprep.subr.mxu0 0.0
  %1209 = vmatpush1.msra.mxu0 0.0
  %1210 = vmatprep.subr.mxu0 0.0
  %1211 = vmatpush1.msra.mxu0 0.0
  %1212 = vmatprep.subr.mxu0 0.0
  %1213 = vmatpush1.msra.mxu0 0.0
  %1214 = vmatprep.mubr.f32.mxu0 0.0
  %1215 = vmatmul.mubr.f32.gmra.mrb[0].mxu0 %v1142
  %v1216 = vpop.f32.mrb[0].mxu0
  %v1217 = vadd.f32 0.0, %v1216
  %v1218 = vpop.f32.mrb[0].mxu0
  %v1219 = vadd.f32 0.0, %v1218
  %1220 = vdwg.mxu0
  %1221 = vmatprep.subr.mxu0 %v374
  %1222 = vmatpush1.msra.mxu0 %v373
  %1223 = vmatprep.subr.mxu0 %v378
  %1224 = vmatpush1.msra.mxu0 %v377
  %1225 = vmatprep.subr.mxu0 %v382
  %1226 = vmatpush1.msra.mxu0 %v381
  %1227 = vmatprep.subr.mxu0 %v386
  %1228 = vmatpush1.msra.mxu0 %v385
  %1229 = vmatprep.subr.mxu0 %v390
  %1230 = vmatpush1.msra.mxu0 %v389
  %1231 = vmatprep.subr.mxu0 %v394
  %1232 = vmatpush1.msra.mxu0 %v393
  %1233 = vmatprep.subr.mxu0 %v398
  %1234 = vmatpush1.msra.mxu0 %v397
  %1235 = vmatprep.subr.mxu0 %v402
  %1236 = vmatpush1.msra.mxu0 %v401
  %1237 = vmatprep.subr.mxu0 %v406
  %1238 = vmatpush1.msra.mxu0 %v405
  %1239 = vmatprep.subr.mxu0 %v410
  %1240 = vmatpush1.msra.mxu0 %v409
  %1241 = vmatprep.subr.mxu0 %v414
  %1242 = vmatpush1.msra.mxu0 %v413
  %1243 = vmatprep.subr.mxu0 %v418
  %1244 = vmatpush1.msra.mxu0 %v417
  %1245 = vmatprep.subr.mxu0 %v422
  %1246 = vmatpush1.msra.mxu0 %v421
  %1247 = vmatprep.subr.mxu0 %v426
  %1248 = vmatpush1.msra.mxu0 %v425
  %1249 = vmatprep.subr.mxu0 %v430
  %1250 = vmatpush1.msra.mxu0 %v429
  %1251 = vmatprep.subr.mxu0 %v434
  %1252 = vmatpush1.msra.mxu0 %v433
  %1253 = vmatprep.subr.mxu0 0.0
  %1254 = vmatpush1.msra.mxu0 0.0
  %1255 = vmatprep.subr.mxu0 0.0
  %1256 = vmatpush1.msra.mxu0 0.0
  %1257 = vmatprep.subr.mxu0 0.0
  %1258 = vmatpush1.msra.mxu0 0.0
  %1259 = vmatprep.subr.mxu0 0.0
  %1260 = vmatpush1.msra.mxu0 0.0
  %1261 = vmatprep.subr.mxu0 0.0
  %1262 = vmatpush1.msra.mxu0 0.0
  %1263 = vmatprep.subr.mxu0 0.0
  %1264 = vmatpush1.msra.mxu0 0.0
  %1265 = vmatprep.subr.mxu0 0.0
  %1266 = vmatpush1.msra.mxu0 0.0
  %1267 = vmatprep.subr.mxu0 0.0
  %1268 = vmatpush1.msra.mxu0 0.0
  %1269 = vmatprep.subr.mxu0 0.0
  %1270 = vmatpush1.msra.mxu0 0.0
  %1271 = vmatprep.subr.mxu0 0.0
  %1272 = vmatpush1.msra.mxu0 0.0
  %1273 = vmatprep.subr.mxu0 0.0
  %1274 = vmatpush1.msra.mxu0 0.0
  %1275 = vmatprep.subr.mxu0 0.0
  %1276 = vmatpush1.msra.mxu0 0.0
  %1277 = vmatprep.subr.mxu0 0.0
  %1278 = vmatpush1.msra.mxu0 0.0
  %1279 = vmatprep.subr.mxu0 0.0
  %1280 = vmatpush1.msra.mxu0 0.0
  %1281 = vmatprep.subr.mxu0 0.0
  %1282 = vmatpush1.msra.mxu0 0.0
  %1283 = vmatprep.subr.mxu0 0.0
  %1284 = vmatpush1.msra.mxu0 0.0
  %1285 = vmatprep.mubr.f32.mxu0 0.0
  %1286 = vmatmul.mubr.f32.gmra.mrb[0].mxu0 %v1142
  %v1287 = vpop.f32.mrb[0].mxu0
  %v1288 = vadd.f32 0.0, %v1287
  %v1289 = vpop.f32.mrb[0].mxu0
  %v1290 = vadd.f32 0.0, %v1289
  %1291 = vdwg.mxu0
  %v1292 = vadd.f32 %v1146, %v1217
  %v1293 = vadd.f32 %v1147, %v1219
  %v1294 = vadd.f32 %v1148, %v1288
  %v1295 = vadd.f32 %v1149, %v1290
  %v1296 = vxor.u32 %v1292, 2147483648
  %v1297 = vmul.f32 %v1296, 1.442695
  %v1298 = vpow.pop %v1297
  %v1299 = vadd.f32 %v1298, 1.0
  %v1300 = vrcp.pop %v1299
  %v1301 = vmul.f32 1.0, %v1300
  %v1302 = vxor.u32 %v1293, 2147483648
  %v1303 = vmul.f32 %v1302, 1.442695
  %v1304 = vpow.pop %v1303
  %v1305 = vadd.f32 %v1304, 1.0
  %v1306 = vrcp.pop %v1305
  %v1307 = vmul.f32 1.0, %v1306
  %v1308 = vtanh.pop %v1294
  %v1309 = vxor.u32 %v1295, 2147483648
  %v1310 = vmul.f32 %v1309, 1.442695
  %v1311 = vpow.pop %v1310
  %v1312 = vadd.f32 %v1311, 1.0
  %v1313 = vrcp.pop %v1312
  %v1314 = vmul.f32 1.0, %v1313
  %v1315 = vmul.f32 %v1307, %v1140
  %v1316 = vmul.f32 %v1301, %v1308
  %v1317 = vadd.f32 %v1315, %v1316
  %v1318 = vtanh.pop %v1317
  %v1319 = vmul.f32 %v1314, %v1318
  %s1320 = smul.u32 5, 4
  %s1321 = smul.addr %s1320, 8
  %s1322 = scalar_lea.vmem [#allocation2], %s1321
  %v1323 = vld [vmem:[%s1322] sm:$0xff]
  %v1324 = vld [vmem:[%s1322 + $0x8] sm:$0xff]
  %v1325 = vld [vmem:[%s1322 + $0x10] sm:$0xff]
  %v1326 = vld [vmem:[%s1322 + $0x18] sm:$0xff]
  %1327 = vmatprep.subr.mxu0 %v372
  %1328 = vmatpush1.msra.mxu0 %v371
  %1329 = vmatprep.subr.mxu0 %v376
  %1330 = vmatpush1.msra.mxu0 %v375
  %1331 = vmatprep.subr.mxu0 %v380
  %1332 = vmatpush1.msra.mxu0 %v379
  %1333 = vmatprep.subr.mxu0 %v384
  %1334 = vmatpush1.msra.mxu0 %v383
  %1335 = vmatprep.subr.mxu0 %v388
  %1336 = vmatpush1.msra.mxu0 %v387
  %1337 = vmatprep.subr.mxu0 %v392
  %1338 = vmatpush1.msra.mxu0 %v391
  %1339 = vmatprep.subr.mxu0 %v396
  %1340 = vmatpush1.msra.mxu0 %v395
  %1341 = vmatprep.subr.mxu0 %v400
  %1342 = vmatpush1.msra.mxu0 %v399
  %1343 = vmatprep.subr.mxu0 %v404
  %1344 = vmatpush1.msra.mxu0 %v403
  %1345 = vmatprep.subr.mxu0 %v408
  %1346 = vmatpush1.msra.mxu0 %v407
  %1347 = vmatprep.subr.mxu0 %v412
  %1348 = vmatpush1.msra.mxu0 %v411
  %1349 = vmatprep.subr.mxu0 %v416
  %1350 = vmatpush1.msra.mxu0 %v415
  %1351 = vmatprep.subr.mxu0 %v420
  %1352 = vmatpush1.msra.mxu0 %v419
  %1353 = vmatprep.subr.mxu0 %v424
  %1354 = vmatpush1.msra.mxu0 %v423
  %1355 = vmatprep.subr.mxu0 %v428
  %1356 = vmatpush1.msra.mxu0 %v427
  %1357 = vmatprep.subr.mxu0 %v432
  %1358 = vmatpush1.msra.mxu0 %v431
  %1359 = vmatprep.subr.mxu0 0.0
  %1360 = vmatpush1.msra.mxu0 0.0
  %1361 = vmatprep.subr.mxu0 0.0
  %1362 = vmatpush1.msra.mxu0 0.0
  %1363 = vmatprep.subr.mxu0 0.0
  %1364 = vmatpush1.msra.mxu0 0.0
  %1365 = vmatprep.subr.mxu0 0.0
  %1366 = vmatpush1.msra.mxu0 0.0
  %1367 = vmatprep.subr.mxu0 0.0
  %1368 = vmatpush1.msra.mxu0 0.0
  %1369 = vmatprep.subr.mxu0 0.0
  %1370 = vmatpush1.msra.mxu0 0.0
  %1371 = vmatprep.subr.mxu0 0.0
  %1372 = vmatpush1.msra.mxu0 0.0
  %1373 = vmatprep.subr.mxu0 0.0
  %1374 = vmatpush1.msra.mxu0 0.0
  %1375 = vmatprep.subr.mxu0 0.0
  %1376 = vmatpush1.msra.mxu0 0.0
  %1377 = vmatprep.subr.mxu0 0.0
  %1378 = vmatpush1.msra.mxu0 0.0
  %1379 = vmatprep.subr.mxu0 0.0
  %1380 = vmatpush1.msra.mxu0 0.0
  %1381 = vmatprep.subr.mxu0 0.0
  %1382 = vmatpush1.msra.mxu0 0.0
  %1383 = vmatprep.subr.mxu0 0.0
  %1384 = vmatpush1.msra.mxu0 0.0
  %1385 = vmatprep.subr.mxu0 0.0
  %1386 = vmatpush1.msra.mxu0 0.0
  %1387 = vmatprep.subr.mxu0 0.0
  %1388 = vmatpush1.msra.mxu0 0.0
  %1389 = vmatprep.subr.mxu0 0.0
  %1390 = vmatpush1.msra.mxu0 0.0
  %1391 = vmatprep.mubr.f32.mxu0 0.0
  %1392 = vmatmul.mubr.f32.gmra.mrb[0].mxu0 %v1319
  %v1393 = vpop.f32.mrb[0].mxu0
  %v1394 = vadd.f32 0.0, %v1393
  %v1395 = vpop.f32.mrb[0].mxu0
  %v1396 = vadd.f32 0.0, %v1395
  %1397 = vdwg.mxu0
  %1398 = vmatprep.subr.mxu0 %v374
  %1399 = vmatpush1.msra.mxu0 %v373
  %1400 = vmatprep.subr.mxu0 %v378
  %1401 = vmatpush1.msra.mxu0 %v377
  %1402 = vmatprep.subr.mxu0 %v382
  %1403 = vmatpush1.msra.mxu0 %v381
  %1404 = vmatprep.subr.mxu0 %v386
  %1405 = vmatpush1.msra.mxu0 %v385
  %1406 = vmatprep.subr.mxu0 %v390
  %1407 = vmatpush1.msra.mxu0 %v389
  %1408 = vmatprep.subr.mxu0 %v394
  %1409 = vmatpush1.msra.mxu0 %v393
  %1410 = vmatprep.subr.mxu0 %v398
  %1411 = vmatpush1.msra.mxu0 %v397
  %1412 = vmatprep.subr.mxu0 %v402
  %1413 = vmatpush1.msra.mxu0 %v401
  %1414 = vmatprep.subr.mxu0 %v406
  %1415 = vmatpush1.msra.mxu0 %v405
  %1416 = vmatprep.subr.mxu0 %v410
  %1417 = vmatpush1.msra.mxu0 %v409
  %1418 = vmatprep.subr.mxu0 %v414
  %1419 = vmatpush1.msra.mxu0 %v413
  %1420 = vmatprep.subr.mxu0 %v418
  %1421 = vmatpush1.msra.mxu0 %v417
  %1422 = vmatprep.subr.mxu0 %v422
  %1423 = vmatpush1.msra.mxu0 %v421
  %1424 = vmatprep.subr.mxu0 %v426
  %1425 = vmatpush1.msra.mxu0 %v425
  %1426 = vmatprep.subr.mxu0 %v430
  %1427 = vmatpush1.msra.mxu0 %v429
  %1428 = vmatprep.subr.mxu0 %v434
  %1429 = vmatpush1.msra.mxu0 %v433
  %1430 = vmatprep.subr.mxu0 0.0
  %1431 = vmatpush1.msra.mxu0 0.0
  %1432 = vmatprep.subr.mxu0 0.0
  %1433 = vmatpush1.msra.mxu0 0.0
  %1434 = vmatprep.subr.mxu0 0.0
  %1435 = vmatpush1.msra.mxu0 0.0
  %1436 = vmatprep.subr.mxu0 0.0
  %1437 = vmatpush1.msra.mxu0 0.0
  %1438 = vmatprep.subr.mxu0 0.0
  %1439 = vmatpush1.msra.mxu0 0.0
  %1440 = vmatprep.subr.mxu0 0.0
  %1441 = vmatpush1.msra.mxu0 0.0
  %1442 = vmatprep.subr.mxu0 0.0
  %1443 = vmatpush1.msra.mxu0 0.0
  %1444 = vmatprep.subr.mxu0 0.0
  %1445 = vmatpush1.msra.mxu0 0.0
  %1446 = vmatprep.subr.mxu0 0.0
  %1447 = vmatpush1.msra.mxu0 0.0
  %1448 = vmatprep.subr.mxu0 0.0
  %1449 = vmatpush1.msra.mxu0 0.0
  %1450 = vmatprep.subr.mxu0 0.0
  %1451 = vmatpush1.msra.mxu0 0.0
  %1452 = vmatprep.subr.mxu0 0.0
  %1453 = vmatpush1.msra.mxu0 0.0
  %1454 = vmatprep.subr.mxu0 0.0
  %1455 = vmatpush1.msra.mxu0 0.0
  %1456 = vmatprep.subr.mxu0 0.0
  %1457 = vmatpush1.msra.mxu0 0.0
  %1458 = vmatprep.subr.mxu0 0.0
  %1459 = vmatpush1.msra.mxu0 0.0
  %1460 = vmatprep.subr.mxu0 0.0
  %1461 = vmatpush1.msra.mxu0 0.0
  %1462 = vmatprep.mubr.f32.mxu0 0.0
  %1463 = vmatmul.mubr.f32.gmra.mrb[0].mxu0 %v1319
  %v1464 = vpop.f32.mrb[0].mxu0
  %v1465 = vadd.f32 0.0, %v1464
  %v1466 = vpop.f32.mrb[0].mxu0
  %v1467 = vadd.f32 0.0, %v1466
  %1468 = vdwg.mxu0
  %v1469 = vadd.f32 %v1323, %v1394
  %v1470 = vadd.f32 %v1324, %v1396
  %v1471 = vadd.f32 %v1325, %v1465
  %v1472 = vadd.f32 %v1326, %v1467
  %v1473 = vxor.u32 %v1469, 2147483648
  %v1474 = vmul.f32 %v1473, 1.442695
  %v1475 = vpow.pop %v1474
  %v1476 = vadd.f32 %v1475, 1.0
  %v1477 = vrcp.pop %v1476
  %v1478 = vmul.f32 1.0, %v1477
  %v1479 = vxor.u32 %v1470, 2147483648
  %v1480 = vmul.f32 %v1479, 1.442695
  %v1481 = vpow.pop %v1480
  %v1482 = vadd.f32 %v1481, 1.0
  %v1483 = vrcp.pop %v1482
  %v1484 = vmul.f32 1.0, %v1483
  %v1485 = vtanh.pop %v1471
  %v1486 = vxor.u32 %v1472, 2147483648
  %v1487 = vmul.f32 %v1486, 1.442695
  %v1488 = vpow.pop %v1487
  %v1489 = vadd.f32 %v1488, 1.0
  %v1490 = vrcp.pop %v1489
  %v1491 = vmul.f32 1.0, %v1490
  %v1492 = vmul.f32 %v1484, %v1317
  %v1493 = vmul.f32 %v1478, %v1485
  %v1494 = vadd.f32 %v1492, %v1493
  %v1495 = vtanh.pop %v1494
  %v1496 = vmul.f32 %v1491, %v1495
  %s1497 = smul.u32 6, 4
  %s1498 = smul.addr %s1497, 8
  %s1499 = scalar_lea.vmem [#allocation2], %s1498
  %v1500 = vld [vmem:[%s1499] sm:$0xff]
  %v1501 = vld [vmem:[%s1499 + $0x8] sm:$0xff]
  %v1502 = vld [vmem:[%s1499 + $0x10] sm:$0xff]
  %v1503 = vld [vmem:[%s1499 + $0x18] sm:$0xff]
  %1504 = vmatprep.subr.mxu0 %v372
  %1505 = vmatpush1.msra.mxu0 %v371
  %1506 = vmatprep.subr.mxu0 %v376
  %1507 = vmatpush1.msra.mxu0 %v375
  %1508 = vmatprep.subr.mxu0 %v380
  %1509 = vmatpush1.msra.mxu0 %v379
  %1510 = vmatprep.subr.mxu0 %v384
  %1511 = vmatpush1.msra.mxu0 %v383
  %1512 = vmatprep.subr.mxu0 %v388
  %1513 = vmatpush1.msra.mxu0 %v387
  %1514 = vmatprep.subr.mxu0 %v392
  %1515 = vmatpush1.msra.mxu0 %v391
  %1516 = vmatprep.subr.mxu0 %v396
  %1517 = vmatpush1.msra.mxu0 %v395
  %1518 = vmatprep.subr.mxu0 %v400
  %1519 = vmatpush1.msra.mxu0 %v399
  %1520 = vmatprep.subr.mxu0 %v404
  %1521 = vmatpush1.msra.mxu0 %v403
  %1522 = vmatprep.subr.mxu0 %v408
  %1523 = vmatpush1.msra.mxu0 %v407
  %1524 = vmatprep.subr.mxu0 %v412
  %1525 = vmatpush1.msra.mxu0 %v411
  %1526 = vmatprep.subr.mxu0 %v416
  %1527 = vmatpush1.msra.mxu0 %v415
  %1528 = vmatprep.subr.mxu0 %v420
  %1529 = vmatpush1.msra.mxu0 %v419
  %1530 = vmatprep.subr.mxu0 %v424
  %1531 = vmatpush1.msra.mxu0 %v423
  %1532 = vmatprep.subr.mxu0 %v428
  %1533 = vmatpush1.msra.mxu0 %v427
  %1534 = vmatprep.subr.mxu0 %v432
  %1535 = vmatpush1.msra.mxu0 %v431
  %1536 = vmatprep.subr.mxu0 0.0
  %1537 = vmatpush1.msra.mxu0 0.0
  %1538 = vmatprep.subr.mxu0 0.0
  %1539 = vmatpush1.msra.mxu0 0.0
  %1540 = vmatprep.subr.mxu0 0.0
  %1541 = vmatpush1.msra.mxu0 0.0
  %1542 = vmatprep.subr.mxu0 0.0
  %1543 = vmatpush1.msra.mxu0 0.0
  %1544 = vmatprep.subr.mxu0 0.0
  %1545 = vmatpush1.msra.mxu0 0.0
  %1546 = vmatprep.subr.mxu0 0.0
  %1547 = vmatpush1.msra.mxu0 0.0
  %1548 = vmatprep.subr.mxu0 0.0
  %1549 = vmatpush1.msra.mxu0 0.0
  %1550 = vmatprep.subr.mxu0 0.0
  %1551 = vmatpush1.msra.mxu0 0.0
  %1552 = vmatprep.subr.mxu0 0.0
  %1553 = vmatpush1.msra.mxu0 0.0
  %1554 = vmatprep.subr.mxu0 0.0
  %1555 = vmatpush1.msra.mxu0 0.0
  %1556 = vmatprep.subr.mxu0 0.0
  %1557 = vmatpush1.msra.mxu0 0.0
  %1558 = vmatprep.subr.mxu0 0.0
  %1559 = vmatpush1.msra.mxu0 0.0
  %1560 = vmatprep.subr.mxu0 0.0
  %1561 = vmatpush1.msra.mxu0 0.0
  %1562 = vmatprep.subr.mxu0 0.0
  %1563 = vmatpush1.msra.mxu0 0.0
  %1564 = vmatprep.subr.mxu0 0.0
  %1565 = vmatpush1.msra.mxu0 0.0
  %1566 = vmatprep.subr.mxu0 0.0
  %1567 = vmatpush1.msra.mxu0 0.0
  %1568 = vmatprep.mubr.f32.mxu0 0.0
  %1569 = vmatmul.mubr.f32.gmra.mrb[0].mxu0 %v1496
  %v1570 = vpop.f32.mrb[0].mxu0
  %v1571 = vadd.f32 0.0, %v1570
  %v1572 = vpop.f32.mrb[0].mxu0
  %v1573 = vadd.f32 0.0, %v1572
  %1574 = vdwg.mxu0
  %1575 = vmatprep.subr.mxu0 %v374
  %1576 = vmatpush1.msra.mxu0 %v373
  %1577 = vmatprep.subr.mxu0 %v378
  %1578 = vmatpush1.msra.mxu0 %v377
  %1579 = vmatprep.subr.mxu0 %v382
  %1580 = vmatpush1.msra.mxu0 %v381
  %1581 = vmatprep.subr.mxu0 %v386
  %1582 = vmatpush1.msra.mxu0 %v385
  %1583 = vmatprep.subr.mxu0 %v390
  %1584 = vmatpush1.msra.mxu0 %v389
  %1585 = vmatprep.subr.mxu0 %v394
  %1586 = vmatpush1.msra.mxu0 %v393
  %1587 = vmatprep.subr.mxu0 %v398
  %1588 = vmatpush1.msra.mxu0 %v397
  %1589 = vmatprep.subr.mxu0 %v402
  %1590 = vmatpush1.msra.mxu0 %v401
  %1591 = vmatprep.subr.mxu0 %v406
  %1592 = vmatpush1.msra.mxu0 %v405
  %1593 = vmatprep.subr.mxu0 %v410
  %1594 = vmatpush1.msra.mxu0 %v409
  %1595 = vmatprep.subr.mxu0 %v414
  %1596 = vmatpush1.msra.mxu0 %v413
  %1597 = vmatprep.subr.mxu0 %v418
  %1598 = vmatpush1.msra.mxu0 %v417
  %1599 = vmatprep.subr.mxu0 %v422
  %1600 = vmatpush1.msra.mxu0 %v421
  %1601 = vmatprep.subr.mxu0 %v426
  %1602 = vmatpush1.msra.mxu0 %v425
  %1603 = vmatprep.subr.mxu0 %v430
  %1604 = vmatpush1.msra.mxu0 %v429
  %1605 = vmatprep.subr.mxu0 %v434
  %1606 = vmatpush1.msra.mxu0 %v433
  %1607 = vmatprep.subr.mxu0 0.0
  %1608 = vmatpush1.msra.mxu0 0.0
  %1609 = vmatprep.subr.mxu0 0.0
  %1610 = vmatpush1.msra.mxu0 0.0
  %1611 = vmatprep.subr.mxu0 0.0
  %1612 = vmatpush1.msra.mxu0 0.0
  %1613 = vmatprep.subr.mxu0 0.0
  %1614 = vmatpush1.msra.mxu0 0.0
  %1615 = vmatprep.subr.mxu0 0.0
  %1616 = vmatpush1.msra.mxu0 0.0
  %1617 = vmatprep.subr.mxu0 0.0
  %1618 = vmatpush1.msra.mxu0 0.0
  %1619 = vmatprep.subr.mxu0 0.0
  %1620 = vmatpush1.msra.mxu0 0.0
  %1621 = vmatprep.subr.mxu0 0.0
  %1622 = vmatpush1.msra.mxu0 0.0
  %1623 = vmatprep.subr.mxu0 0.0
  %1624 = vmatpush1.msra.mxu0 0.0
  %1625 = vmatprep.subr.mxu0 0.0
  %1626 = vmatpush1.msra.mxu0 0.0
  %1627 = vmatprep.subr.mxu0 0.0
  %1628 = vmatpush1.msra.mxu0 0.0
  %1629 = vmatprep.subr.mxu0 0.0
  %1630 = vmatpush1.msra.mxu0 0.0
  %1631 = vmatprep.subr.mxu0 0.0
  %1632 = vmatpush1.msra.mxu0 0.0
  %1633 = vmatprep.subr.mxu0 0.0
  %1634 = vmatpush1.msra.mxu0 0.0
  %1635 = vmatprep.subr.mxu0 0.0
  %1636 = vmatpush1.msra.mxu0 0.0
  %1637 = vmatprep.subr.mxu0 0.0
  %1638 = vmatpush1.msra.mxu0 0.0
  %1639 = vmatprep.mubr.f32.mxu0 0.0
  %1640 = vmatmul.mubr.f32.gmra.mrb[0].mxu0 %v1496
  %v1641 = vpop.f32.mrb[0].mxu0
  %v1642 = vadd.f32 0.0, %v1641
  %v1643 = vpop.f32.mrb[0].mxu0
  %v1644 = vadd.f32 0.0, %v1643
  %1645 = vdwg.mxu0
  %v1646 = vadd.f32 %v1500, %v1571
  %v1647 = vadd.f32 %v1501, %v1573
  %v1648 = vadd.f32 %v1502, %v1642
  %v1649 = vadd.f32 %v1503, %v1644
  %v1650 = vxor.u32 %v1646, 2147483648
  %v1651 = vmul.f32 %v1650, 1.442695
  %v1652 = vpow.pop %v1651
  %v1653 = vadd.f32 %v1652, 1.0
  %v1654 = vrcp.pop %v1653
  %v1655 = vmul.f32 1.0, %v1654
  %v1656 = vxor.u32 %v1647, 2147483648
  %v1657 = vmul.f32 %v1656, 1.442695
  %v1658 = vpow.pop %v1657
  %v1659 = vadd.f32 %v1658, 1.0
  %v1660 = vrcp.pop %v1659
  %v1661 = vmul.f32 1.0, %v1660
  %v1662 = vtanh.pop %v1648
  %v1663 = vxor.u32 %v1649, 2147483648
  %v1664 = vmul.f32 %v1663, 1.442695
  %v1665 = vpow.pop %v1664
  %v1666 = vadd.f32 %v1665, 1.0
  %v1667 = vrcp.pop %v1666
  %v1668 = vmul.f32 1.0, %v1667
  %v1669 = vmul.f32 %v1661, %v1494
  %v1670 = vmul.f32 %v1655, %v1662
  %v1671 = vadd.f32 %v1669, %v1670
  %v1672 = vtanh.pop %v1671
  %v1673 = vmul.f32 %v1668, %v1672
  %s1674 = smul.u32 7, 4
  %s1675 = smul.addr %s1674, 8
  %s1676 = scalar_lea.vmem [#allocation2], %s1675
  %v1677 = vld [vmem:[%s1676] sm:$0xff]
  %v1678 = vld [vmem:[%s1676 + $0x8] sm:$0xff]
  %v1679 = vld [vmem:[%s1676 + $0x10] sm:$0xff]
  %v1680 = vld [vmem:[%s1676 + $0x18] sm:$0xff]
  %1681 = vmatprep.subr.mxu0 %v372
  %1682 = vmatpush1.msra.mxu0 %v371
  %1683 = vmatprep.subr.mxu0 %v376
  %1684 = vmatpush1.msra.mxu0 %v375
  %1685 = vmatprep.subr.mxu0 %v380
  %1686 = vmatpush1.msra.mxu0 %v379
  %1687 = vmatprep.subr.mxu0 %v384
  %1688 = vmatpush1.msra.mxu0 %v383
  %1689 = vmatprep.subr.mxu0 %v388
  %1690 = vmatpush1.msra.mxu0 %v387
  %1691 = vmatprep.subr.mxu0 %v392
  %1692 = vmatpush1.msra.mxu0 %v391
  %1693 = vmatprep.subr.mxu0 %v396
  %1694 = vmatpush1.msra.mxu0 %v395
  %1695 = vmatprep.subr.mxu0 %v400
  %1696 = vmatpush1.msra.mxu0 %v399
  %1697 = vmatprep.subr.mxu0 %v404
  %1698 = vmatpush1.msra.mxu0 %v403
  %1699 = vmatprep.subr.mxu0 %v408
  %1700 = vmatpush1.msra.mxu0 %v407
  %1701 = vmatprep.subr.mxu0 %v412
  %1702 = vmatpush1.msra.mxu0 %v411
  %1703 = vmatprep.subr.mxu0 %v416
  %1704 = vmatpush1.msra.mxu0 %v415
  %1705 = vmatprep.subr.mxu0 %v420
  %1706 = vmatpush1.msra.mxu0 %v419
  %1707 = vmatprep.subr.mxu0 %v424
  %1708 = vmatpush1.msra.mxu0 %v423
  %1709 = vmatprep.subr.mxu0 %v428
  %1710 = vmatpush1.msra.mxu0 %v427
  %1711 = vmatprep.subr.mxu0 %v432
  %1712 = vmatpush1.msra.mxu0 %v431
  %1713 = vmatprep.subr.mxu0 0.0
  %1714 = vmatpush1.msra.mxu0 0.0
  %1715 = vmatprep.subr.mxu0 0.0
  %1716 = vmatpush1.msra.mxu0 0.0
  %1717 = vmatprep.subr.mxu0 0.0
  %1718 = vmatpush1.msra.mxu0 0.0
  %1719 = vmatprep.subr.mxu0 0.0
  %1720 = vmatpush1.msra.mxu0 0.0
  %1721 = vmatprep.subr.mxu0 0.0
  %1722 = vmatpush1.msra.mxu0 0.0
  %1723 = vmatprep.subr.mxu0 0.0
  %1724 = vmatpush1.msra.mxu0 0.0
  %1725 = vmatprep.subr.mxu0 0.0
  %1726 = vmatpush1.msra.mxu0 0.0
  %1727 = vmatprep.subr.mxu0 0.0
  %1728 = vmatpush1.msra.mxu0 0.0
  %1729 = vmatprep.subr.mxu0 0.0
  %1730 = vmatpush1.msra.mxu0 0.0
  %1731 = vmatprep.subr.mxu0 0.0
  %1732 = vmatpush1.msra.mxu0 0.0
  %1733 = vmatprep.subr.mxu0 0.0
  %1734 = vmatpush1.msra.mxu0 0.0
  %1735 = vmatprep.subr.mxu0 0.0
  %1736 = vmatpush1.msra.mxu0 0.0
  %1737 = vmatprep.subr.mxu0 0.0
  %1738 = vmatpush1.msra.mxu0 0.0
  %1739 = vmatprep.subr.mxu0 0.0
  %1740 = vmatpush1.msra.mxu0 0.0
  %1741 = vmatprep.subr.mxu0 0.0
  %1742 = vmatpush1.msra.mxu0 0.0
  %1743 = vmatprep.subr.mxu0 0.0
  %1744 = vmatpush1.msra.mxu0 0.0
  %1745 = vmatprep.mubr.f32.mxu0 0.0
  %1746 = vmatmul.mubr.f32.gmra.mrb[0].mxu0 %v1673
  %v1747 = vpop.f32.mrb[0].mxu0
  %v1748 = vadd.f32 0.0, %v1747
  %v1749 = vpop.f32.mrb[0].mxu0
  %v1750 = vadd.f32 0.0, %v1749
  %1751 = vdwg.mxu0
  %1752 = vmatprep.subr.mxu0 %v374
  %1753 = vmatpush1.msra.mxu0 %v373
  %1754 = vmatprep.subr.mxu0 %v378
  %1755 = vmatpush1.msra.mxu0 %v377
  %1756 = vmatprep.subr.mxu0 %v382
  %1757 = vmatpush1.msra.mxu0 %v381
  %1758 = vmatprep.subr.mxu0 %v386
  %1759 = vmatpush1.msra.mxu0 %v385
  %1760 = vmatprep.subr.mxu0 %v390
  %1761 = vmatpush1.msra.mxu0 %v389
  %1762 = vmatprep.subr.mxu0 %v394
  %1763 = vmatpush1.msra.mxu0 %v393
  %1764 = vmatprep.subr.mxu0 %v398
  %1765 = vmatpush1.msra.mxu0 %v397
  %1766 = vmatprep.subr.mxu0 %v402
  %1767 = vmatpush1.msra.mxu0 %v401
  %1768 = vmatprep.subr.mxu0 %v406
  %1769 = vmatpush1.msra.mxu0 %v405
  %1770 = vmatprep.subr.mxu0 %v410
  %1771 = vmatpush1.msra.mxu0 %v409
  %1772 = vmatprep.subr.mxu0 %v414
  %1773 = vmatpush1.msra.mxu0 %v413
  %1774 = vmatprep.subr.mxu0 %v418
  %1775 = vmatpush1.msra.mxu0 %v417
  %1776 = vmatprep.subr.mxu0 %v422
  %1777 = vmatpush1.msra.mxu0 %v421
  %1778 = vmatprep.subr.mxu0 %v426
  %1779 = vmatpush1.msra.mxu0 %v425
  %1780 = vmatprep.subr.mxu0 %v430
  %1781 = vmatpush1.msra.mxu0 %v429
  %1782 = vmatprep.subr.mxu0 %v434
  %1783 = vmatpush1.msra.mxu0 %v433
  %1784 = vmatprep.subr.mxu0 0.0
  %1785 = vmatpush1.msra.mxu0 0.0
  %1786 = vmatprep.subr.mxu0 0.0
  %1787 = vmatpush1.msra.mxu0 0.0
  %1788 = vmatprep.subr.mxu0 0.0
  %1789 = vmatpush1.msra.mxu0 0.0
  %1790 = vmatprep.subr.mxu0 0.0
  %1791 = vmatpush1.msra.mxu0 0.0
  %1792 = vmatprep.subr.mxu0 0.0
  %1793 = vmatpush1.msra.mxu0 0.0
  %1794 = vmatprep.subr.mxu0 0.0
  %1795 = vmatpush1.msra.mxu0 0.0
  %1796 = vmatprep.subr.mxu0 0.0
  %1797 = vmatpush1.msra.mxu0 0.0
  %1798 = vmatprep.subr.mxu0 0.0
  %1799 = vmatpush1.msra.mxu0 0.0
  %1800 = vmatprep.subr.mxu0 0.0
  %1801 = vmatpush1.msra.mxu0 0.0
  %1802 = vmatprep.subr.mxu0 0.0
  %1803 = vmatpush1.msra.mxu0 0.0
  %1804 = vmatprep.subr.mxu0 0.0
  %1805 = vmatpush1.msra.mxu0 0.0
  %1806 = vmatprep.subr.mxu0 0.0
  %1807 = vmatpush1.msra.mxu0 0.0
  %1808 = vmatprep.subr.mxu0 0.0
  %1809 = vmatpush1.msra.mxu0 0.0
  %1810 = vmatprep.subr.mxu0 0.0
  %1811 = vmatpush1.msra.mxu0 0.0
  %1812 = vmatprep.subr.mxu0 0.0
  %1813 = vmatpush1.msra.mxu0 0.0
  %1814 = vmatprep.subr.mxu0 0.0
  %1815 = vmatpush1.msra.mxu0 0.0
  %1816 = vmatprep.mubr.f32.mxu0 0.0
  %1817 = vmatmul.mubr.f32.gmra.mrb[0].mxu0 %v1673
  %v1818 = vpop.f32.mrb[0].mxu0
  %v1819 = vadd.f32 0.0, %v1818
  %v1820 = vpop.f32.mrb[0].mxu0
  %v1821 = vadd.f32 0.0, %v1820
  %1822 = vdwg.mxu0
  %v1823 = vadd.f32 %v1677, %v1748
  %v1824 = vadd.f32 %v1678, %v1750
  %v1825 = vadd.f32 %v1679, %v1819
  %v1826 = vadd.f32 %v1680, %v1821
  %v1827 = vxor.u32 %v1823, 2147483648
  %v1828 = vmul.f32 %v1827, 1.442695
  %v1829 = vpow.pop %v1828
  %v1830 = vadd.f32 %v1829, 1.0
  %v1831 = vrcp.pop %v1830
  %v1832 = vmul.f32 1.0, %v1831
  %v1833 = vxor.u32 %v1824, 2147483648
  %v1834 = vmul.f32 %v1833, 1.442695
  %v1835 = vpow.pop %v1834
  %v1836 = vadd.f32 %v1835, 1.0
  %v1837 = vrcp.pop %v1836
  %v1838 = vmul.f32 1.0, %v1837
  %v1839 = vtanh.pop %v1825
  %v1840 = vxor.u32 %v1826, 2147483648
  %v1841 = vmul.f32 %v1840, 1.442695
  %v1842 = vpow.pop %v1841
  %v1843 = vadd.f32 %v1842, 1.0
  %v1844 = vrcp.pop %v1843
  %v1845 = vmul.f32 1.0, %v1844
  %v1846 = vmul.f32 %v1838, %v1671
  %v1847 = vmul.f32 %v1832, %v1839
  %v1848 = vadd.f32 %v1846, %v1847
  %v1849 = vtanh.pop %v1848
  %v1850 = vmul.f32 %v1845, %v1849
  %v1851 = vld [vmem:[%s4] sm:$0xff]
  %v1852 = vld [vmem:[%s4 + $0x8] sm:$0xff]
  %v1853 = vld [vmem:[%s4 + $0x10] sm:$0xff]
  %v1854 = vld [vmem:[%s4 + $0x18] sm:$0xff]
  %v1855 = vld [vmem:[%s4 + $0x20] sm:$0xff]
  %v1856 = vld [vmem:[%s4 + $0x28] sm:$0xff]
  %v1857 = vld [vmem:[%s4 + $0x30] sm:$0xff]
  %v1858 = vld [vmem:[%s4 + $0x38] sm:$0xff]
  %v1859 = vld [vmem:[%s4 + $0x40] sm:$0xff]
  %v1860 = vld [vmem:[%s4 + $0x48] sm:$0xff]
  %v1861 = vld [vmem:[%s4 + $0x50] sm:$0xff]
  %v1862 = vld [vmem:[%s4 + $0x58] sm:$0xff]
  %v1863 = vld [vmem:[%s4 + $0x60] sm:$0xff]
  %v1864 = vld [vmem:[%s4 + $0x68] sm:$0xff]
  %v1865 = vld [vmem:[%s4 + $0x70] sm:$0xff]
  %v1866 = vld [vmem:[%s4 + $0x78] sm:$0xff]
  %v1867 = vld [vmem:[%s5] sm:$0x1]
  %v1869 = vlaneseq
  %v1870 = vshrl.u32 %v1869, 7
  %v1871 = vsub.s32 0, %v1870
  %v1872 = vrot.slane %v1867, %v1871
  %1874 = vmatprep.subr.mxu0 0.0
  %1875 = vmatpush1.msra.mxu0 %v1851
  %1876 = vmatprep.subr.mxu0 0.0
  %1877 = vmatpush1.msra.mxu0 %v1852
  %1878 = vmatprep.subr.mxu0 0.0
  %1879 = vmatpush1.msra.mxu0 %v1853
  %1880 = vmatprep.subr.mxu0 0.0
  %1881 = vmatpush1.msra.mxu0 %v1854
  %1882 = vmatprep.subr.mxu0 0.0
  %1883 = vmatpush1.msra.mxu0 %v1855
  %1884 = vmatprep.subr.mxu0 0.0
  %1885 = vmatpush1.msra.mxu0 %v1856
  %1886 = vmatprep.subr.mxu0 0.0
  %1887 = vmatpush1.msra.mxu0 %v1857
  %1888 = vmatprep.subr.mxu0 0.0
  %1889 = vmatpush1.msra.mxu0 %v1858
  %1890 = vmatprep.subr.mxu0 0.0
  %1891 = vmatpush1.msra.mxu0 %v1859
  %1892 = vmatprep.subr.mxu0 0.0
  %1893 = vmatpush1.msra.mxu0 %v1860
  %1894 = vmatprep.subr.mxu0 0.0
  %1895 = vmatpush1.msra.mxu0 %v1861
  %1896 = vmatprep.subr.mxu0 0.0
  %1897 = vmatpush1.msra.mxu0 %v1862
  %1898 = vmatprep.subr.mxu0 0.0
  %1899 = vmatpush1.msra.mxu0 %v1863
  %1900 = vmatprep.subr.mxu0 0.0
  %1901 = vmatpush1.msra.mxu0 %v1864
  %1902 = vmatprep.subr.mxu0 0.0
  %1903 = vmatpush1.msra.mxu0 %v1865
  %1904 = vmatprep.subr.mxu0 0.0
  %1905 = vmatpush1.msra.mxu0 %v1866
  %1906 = vmatprep.subr.mxu0 0.0
  %1907 = vmatpush1.msra.mxu0 0.0
  %1908 = vmatprep.subr.mxu0 0.0
  %1909 = vmatpush1.msra.mxu0 0.0
  %1910 = vmatprep.subr.mxu0 0.0
  %1911 = vmatpush1.msra.mxu0 0.0
  %1912 = vmatprep.subr.mxu0 0.0
  %1913 = vmatpush1.msra.mxu0 0.0
  %1914 = vmatprep.subr.mxu0 0.0
  %1915 = vmatpush1.msra.mxu0 0.0
  %1916 = vmatprep.subr.mxu0 0.0
  %1917 = vmatpush1.msra.mxu0 0.0
  %1918 = vmatprep.subr.mxu0 0.0
  %1919 = vmatpush1.msra.mxu0 0.0
  %1920 = vmatprep.subr.mxu0 0.0
  %1921 = vmatpush1.msra.mxu0 0.0
  %1922 = vmatprep.subr.mxu0 0.0
  %1923 = vmatpush1.msra.mxu0 0.0
  %1924 = vmatprep.subr.mxu0 0.0
  %1925 = vmatpush1.msra.mxu0 0.0
  %1926 = vmatprep.subr.mxu0 0.0
  %1927 = vmatpush1.msra.mxu0 0.0
  %1928 = vmatprep.subr.mxu0 0.0
  %1929 = vmatpush1.msra.mxu0 0.0
  %1930 = vmatprep.subr.mxu0 0.0
  %1931 = vmatpush1.msra.mxu0 0.0
  %1932 = vmatprep.subr.mxu0 0.0
  %1933 = vmatpush1.msra.mxu0 0.0
  %1934 = vmatprep.subr.mxu0 0.0
  %1935 = vmatpush1.msra.mxu0 0.0
  %1936 = vmatprep.subr.mxu0 0.0
  %1937 = vmatpush1.msra.mxu0 0.0
  %1938 = vmatprep.mubr.f32.mxu0 0.0
  %1939 = vmatmul.mubr.f32.gmra.mrb[0].mxu0 %v1850
  %v1940 = vpop.f32.mrb[0].mxu0
  %v1941 = vadd.f32 %v1872, %v1940
  %v1942 = vpop.f32.mrb[0].mxu0
  %1943 = vdwg.mxu0
  %1944 = vst [vmem:[%s6] sm:$0xff] %v1941
  %1945 = vst [vmem:[%s7] sm:$0xff] %v1850
  %1946 = vst [vmem:[%s8] sm:$0xff] %v1848
  // Predicated region
  $region26: #{char_lstm_forward.1} parent=0 // pred_check
    _
  $region27: #{char_lstm_forward.1} parent=0 // pred_check_branch
    %1948 = sbr.rel (0) target = $region29
  $region28: #{char_lstm_forward.1} parent=0 // pred_region
    _
  $region29: #{char_lstm_forward.1} parent=0 // pred_fallthru
    _
  // Predicated region
  $region30: #{char_lstm_forward.1} parent=0 // pred_check
    _
  $region31: #{char_lstm_forward.1} parent=0 // pred_check_branch
    %1950 = sbr.rel (0) target = $region33
  $region32: #{char_lstm_forward.1} parent=0 // pred_region
    _
  $region33: #{char_lstm_forward.1} parent=0 // pred_fallthru
    _
  // Predicated region
  $region34: #{char_lstm_forward.1} parent=0 // pred_check
    _
  $region35: #{char_lstm_forward.1} parent=0 // pred_check_branch
    %1952 = sbr.rel (0) target = $region37
  $region36: #{char_lstm_forward.1} parent=0 // pred_region
    _
  $region37: #{char_lstm_forward.1} parent=0 // pred_fallthru
    _
  // Predicated region
  $region38: #{char_lstm_forward.1} parent=0 // pred_check
    _
  $region39: #{char_lstm_forward.1} parent=0 // pred_check_branch
    %1954 = sbr.rel (0) target = $region41
  $region40: #{char_lstm_forward.1} parent=0 // pred_region
    _
  $region41: #{char_lstm_forward.1} parent=0 // pred_fallthru
    _
  // Predicated region
  $region42: #{char_lstm_forward.1} parent=0 // pred_check
    _
  $region43: #{char_lstm_forward.1} parent=0 // pred_check_branch
    %1956 = sbr.rel (0) target = $region45
  $region44: #{char_lstm_forward.1} parent=0 // pred_region
    _
  $region45: #{char_lstm_forward.1} parent=0 // pred_fallthru
    _
  // Predicated region
  $region46: #{char_lstm_forward.1} parent=0 // pred_check
    _
  $region47: #{char_lstm_forward.1} parent=0 // pred_check_branch
    %1958 = sbr.rel (0) target = $region49
  $region48: #{char_lstm_forward.1} parent=0 // pred_region
    _
  $region49: #{char_lstm_forward.1} parent=0 // pred_fallthru
    _

</llo_original>
